<compile_context>
chip_gen: v6e
topology: v6e:2x2x1
jax: 0.10.0
libtpu: 0.0.40
codegen_flags: <defaults>
</compile_context>

<pallas_src>
import math

import jax
import jax.numpy as jnp
import numpy as np
from jax.experimental import pallas as pl
from jax.experimental.pallas import tpu as pltpu

# ---------------- model hyper-parameters (small, consistent with module) ----
B = 2          # batch
T = 8          # sequence length (n_ctx)
D = 32         # n_state
N_HEAD = 4     # n_head
HD = D // N_HEAD
D_MLP = 4 * D
LN_EPS = 1e-5
BT = B * T
_INV_SQRT2 = 1.0 / math.sqrt(2.0)


def _layernorm(v, g, b):
    """v: (R, D); g, b: (1, D) -> 2-D broadcasting only."""
    mu = jnp.mean(v, axis=-1, keepdims=True)
    var = jnp.mean((v - mu) ** 2, axis=-1, keepdims=True)
    return (v - mu) * jax.lax.rsqrt(var + LN_EPS) * g + b


def _erf(z):
    """Abramowitz & Stegun 7.1.26 rational erf approx (max abs err 1.5e-7).

    Uses only exp / mul / add / div / where, all of which have Mosaic
    lowerings, so exact-GELU semantics survive inside the kernel.
    """
    a1, a2, a3, a4, a5 = (0.254829592, -0.284496736, 1.421413741,
                          -1.453152027, 1.061405429)
    p = 0.3275911
    az = jnp.abs(z)
    t = 1.0 / (1.0 + p * az)
    poly = ((((a5 * t + a4) * t + a3) * t + a2) * t + a1) * t
    e = 1.0 - poly * jnp.exp(-az * az)
    return jnp.where(z < 0.0, -e, e)


def _gelu_exact(x):
    return 0.5 * x * (1.0 + _erf(x * _INV_SQRT2))


def residual_block_kernel(
    x_ref,                           # (B*T, D) fp32
    g1_ref, be1_ref,                 # attn_ln gamma/beta            (1, D)
    wqkv_ref, bqkv_ref,              # fused [q|k|v] W (D, 3D), b (1, 3D)
                                     #   (HD**-0.25 already folded into q & k)
    wo_ref, bo_ref,                  # out   W (D, D), b (1, D)
    g2_ref, be2_ref,                 # mlp_ln gamma/beta             (1, D)
    w1_ref, b1_ref,                  # mlp fc1 W (D, 4D), b (1, 4D)
    w2_ref, b2_ref,                  # mlp fc2 W (4D, D), b (1, D)
    o_ref,                           # (B*T, D)
    wv_ref,                          # VMEM scratch (B*T, D): concat-free head outputs
):
    x = x_ref[...]                                                   # (BT, D)

    # ---- self-attention branch: x + out_proj(attn(attn_ln(x))) ----
    xn = _layernorm(x, g1_ref[...], be1_ref[...])

    # Single fused QKV projection for all batches at once.
    qkv = (jnp.dot(xn, wqkv_ref[...], preferred_element_type=jnp.float32)
           + bqkv_ref[...])                                          # (BT, 3D)
    q = qkv[:, 0:D]           # already scaled by HD**-0.25 (folded into W)
    k = qkv[:, D:2 * D]       # already scaled by HD**-0.25 (folded into W)
    v = qkv[:, 2 * D:3 * D]

    # Static (batch, head) loops on tiny tiles; head outputs land directly at
    # their final lane offsets in the scratch (no jnp.concatenate).
    for b in range(B):
        rows = slice(b * T, (b + 1) * T)
        for h in range(N_HEAD):
            cols = slice(h * HD, (h + 1) * HD)
            qh = q[rows, cols]                                       # (T, HD)
            kh = k[rows, cols]                                       # (T, HD)
            vh = v[rows, cols]                                       # (T, HD)
            # q @ k^T via dot_general (contract last dims) — no transpose op.
            s = jax.lax.dot_general(
                qh, kh, (((1,), (1,)), ((), ())),
                preferred_element_type=jnp.float32)                  # (T, T)
            s = s - jnp.max(s, axis=-1, keepdims=True)
            p = jnp.exp(s)
            p = p * pl.reciprocal(jnp.sum(p, axis=-1, keepdims=True),
                                  approx=True)
            wv_ref[rows, cols] = jnp.dot(p, vh,
                                         preferred_element_type=jnp.float32)

    attn_out = (jnp.dot(wv_ref[...], wo_ref[...],
                        preferred_element_type=jnp.float32) + bo_ref[...])
    x = x + attn_out

    # ---- MLP branch: x + fc2(gelu(fc1(mlp_ln(x)))) ----
    xn2 = _layernorm(x, g2_ref[...], be2_ref[...])
    h1 = (jnp.dot(xn2, w1_ref[...], preferred_element_type=jnp.float32)
          + b1_ref[...])
    h1 = _gelu_exact(h1)                 # exact (erf) GELU, like nn.GELU()
    y = (jnp.dot(h1, w2_ref[...], preferred_element_type=jnp.float32)
         + b2_ref[...])

    o_ref[...] = x + y


def residual_attention_block(x, params):
    """x: (B, T, D) fp32. params: dict of weights. Returns (B, T, D)."""
    scale = float(HD) ** (-0.25)
    # Fold the attention scale into q & k projections; fuse [q|k|v] weights.
    w_qkv = jnp.concatenate(
        [params["wq"] * scale, params["wk"] * scale, params["wv"]], axis=1)
    b_qkv = jnp.concatenate(
        [params["bq"] * scale, jnp.zeros((1, D), jnp.float32), params["bv"]],
        axis=1)

    x2 = x.reshape(BT, D)     # flatten batch into rows (host-side, free)

    full = lambda shape: pl.BlockSpec(shape, lambda i: tuple(0 for _ in shape))

    out = pl.pallas_call(
        residual_block_kernel,
        out_shape=jax.ShapeDtypeStruct((BT, D), jnp.float32),
        grid=(1,),                                   # single step: no per-step overhead
        in_specs=[
            full((BT, D)),                           # x (flattened)
            full((1, D)), full((1, D)),              # attn_ln g, b
            full((D, 3 * D)), full((1, 3 * D)),      # fused Wqkv, bqkv
            full((D, D)), full((1, D)),              # Wo, bo
            full((1, D)), full((1, D)),              # mlp_ln g, b
            full((D, D_MLP)), full((1, D_MLP)),      # W1, b1
            full((D_MLP, D)), full((1, D)),          # W2, b2
        ],
        out_specs=full((BT, D)),
        scratch_shapes=[pltpu.VMEM((BT, D), jnp.float32)],
        compiler_params=pltpu.CompilerParams(
            dimension_semantics=("arbitrary",)),
    )(
        x2,
        params["g1"], params["be1"],
        w_qkv, b_qkv,
        params["wo"], params["bo"],
        params["g2"], params["be2"],
        params["w1"], params["b1"],
        params["w2"], params["b2"],
    )
    return out.reshape(B, T, D)


def init_params(key):
    ks = jax.random.split(key, 10)
    s = 0.05
    return {
        "g1": jnp.ones((1, D), jnp.float32),
        "be1": jnp.zeros((1, D), jnp.float32),
        "wq": s * jax.random.normal(ks[0], (D, D), jnp.float32),
        "bq": s * jax.random.normal(ks[1], (1, D), jnp.float32),
        "wk": s * jax.random.normal(ks[2], (D, D), jnp.float32),
        "wv": s * jax.random.normal(ks[3], (D, D), jnp.float32),
        "bv": s * jax.random.normal(ks[4], (1, D), jnp.float32),
        "wo": s * jax.random.normal(ks[5], (D, D), jnp.float32),
        "bo": s * jax.random.normal(ks[6], (1, D), jnp.float32),
        "g2": jnp.ones((1, D), jnp.float32),
        "be2": jnp.zeros((1, D), jnp.float32),
        "w1": s * jax.random.normal(ks[7], (D, D_MLP), jnp.float32),
        "b1": s * jax.random.normal(ks[8], (1, D_MLP), jnp.float32),
        "w2": s * jax.random.normal(ks[9], (D_MLP, D), jnp.float32),
        "b2": jnp.zeros((1, D), jnp.float32),
    }


def reference(x, p):
    """Pure-JAX reference mirroring the PyTorch forward (for validation)."""
    def ln(v, g, b):
        mu = v.mean(-1, keepdims=True)
        var = ((v - mu) ** 2).mean(-1, keepdims=True)
        return (v - mu) / jnp.sqrt(var + LN_EPS) * g + b

    def mha(v):
        q = v @ p["wq"] + p["bq"][0]
        k = v @ p["wk"]
        vv = v @ p["wv"] + p["bv"][0]
        scale = HD ** (-0.25)
        qh = q.reshape(B, T, N_HEAD, HD).transpose(0, 2, 1, 3) * scale
        kh = k.reshape(B, T, N_HEAD, HD).transpose(0, 2, 3, 1) * scale
        vh = vv.reshape(B, T, N_HEAD, HD).transpose(0, 2, 1, 3)
        qk = qh @ kh
        w = jax.nn.softmax(qk, axis=-1)
        wv = (w @ vh).transpose(0, 2, 1, 3).reshape(B, T, D)
        return wv @ p["wo"] + p["bo"][0]

    x = x + mha(ln(x, p["g1"][0], p["be1"][0]))
    xn = ln(x, p["g2"][0], p["be2"][0])
    h = jax.nn.gelu(xn @ p["w1"] + p["b1"][0], approximate=False)
    return x + (h @ p["w2"] + p["b2"][0])


if __name__ == "__main__":
    key = jax.random.PRNGKey(0)
    kx, kp = jax.random.split(key)
    x = jax.random.normal(kx, (B, T, D), jnp.float32)
    params = init_params(kp)

    out = residual_attention_block(x, params)
    out = jax.block_until_ready(out)

    ref = jax.block_until_ready(reference(x, params))
    assert out.shape == (B, T, D)
    # Tolerance 2e-3: the softmax denominator uses the EUP approximate
    # reciprocal (pl.reciprocal(..., approx=True)); the in-kernel erf
    # polynomial contributes <1e-6.
    np.testing.assert_allclose(np.asarray(out), np.asarray(ref),
                               rtol=2e-3, atol=2e-3)
    print("KERNEL_OK")
</pallas_src>

<mosaic_0001>
module attributes {stable_mosaic.version = 11 : i64} {
  func.func @residual_block_kernel(%arg0: i32, %arg1: memref<16x32xf32, #tpu.memory_space<vmem>>, %arg2: memref<1x32xf32, #tpu.memory_space<vmem>>, %arg3: memref<1x32xf32, #tpu.memory_space<vmem>>, %arg4: memref<32x96xf32, #tpu.memory_space<vmem>>, %arg5: memref<1x96xf32, #tpu.memory_space<vmem>>, %arg6: memref<32x32xf32, #tpu.memory_space<vmem>>, %arg7: memref<1x32xf32, #tpu.memory_space<vmem>>, %arg8: memref<1x32xf32, #tpu.memory_space<vmem>>, %arg9: memref<1x32xf32, #tpu.memory_space<vmem>>, %arg10: memref<32x128xf32, #tpu.memory_space<vmem>>, %arg11: memref<1x128xf32, #tpu.memory_space<vmem>>, %arg12: memref<128x32xf32, #tpu.memory_space<vmem>>, %arg13: memref<1x32xf32, #tpu.memory_space<vmem>>, %arg14: memref<16x32xf32, #tpu.memory_space<vmem>>, %arg15: memref<16x32xf32, #tpu.memory_space<vmem>>) attributes {dimension_semantics = [#tpu.dimension_semantics<arbitrary>], iteration_bounds = array<i64: 1>, scalar_prefetch = 0 : i64, scratch_operands = 1 : i64, tpu.core_type = #tpu.core_type<tc>, window_params = [{pipeline_mode = #tpu.pipeline_mode<synchronous>, transform_indices = @transform_0, window_bounds = array<i64: 16, 32>}, {pipeline_mode = #tpu.pipeline_mode<synchronous>, transform_indices = @transform_1, window_bounds = array<i64: 1, 32>}, {pipeline_mode = #tpu.pipeline_mode<synchronous>, transform_indices = @transform_2, window_bounds = array<i64: 1, 32>}, {pipeline_mode = #tpu.pipeline_mode<synchronous>, transform_indices = @transform_3, window_bounds = array<i64: 32, 96>}, {pipeline_mode = #tpu.pipeline_mode<synchronous>, transform_indices = @transform_4, window_bounds = array<i64: 1, 96>}, {pipeline_mode = #tpu.pipeline_mode<synchronous>, transform_indices = @transform_5, window_bounds = array<i64: 32, 32>}, {pipeline_mode = #tpu.pipeline_mode<synchronous>, transform_indices = @transform_6, window_bounds = array<i64: 1, 32>}, {pipeline_mode = #tpu.pipeline_mode<synchronous>, transform_indices = @transform_7, window_bounds = array<i64: 1, 32>}, {pipeline_mode = #tpu.pipeline_mode<synchronous>, transform_indices = @transform_8, window_bounds = array<i64: 1, 32>}, {pipeline_mode = #tpu.pipeline_mode<synchronous>, transform_indices = @transform_9, window_bounds = array<i64: 32, 128>}, {pipeline_mode = #tpu.pipeline_mode<synchronous>, transform_indices = @transform_10, window_bounds = array<i64: 1, 128>}, {pipeline_mode = #tpu.pipeline_mode<synchronous>, transform_indices = @transform_11, window_bounds = array<i64: 128, 32>}, {pipeline_mode = #tpu.pipeline_mode<synchronous>, transform_indices = @transform_12, window_bounds = array<i64: 1, 32>}, {pipeline_mode = #tpu.pipeline_mode<synchronous>, transform_indices = @transform_13, window_bounds = array<i64: 16, 32>}]} {
    %c0 = arith.constant 0 : index
    %c0_0 = arith.constant 0 : index
    %0 = vector.load %arg1[%c0, %c0_0] : memref<16x32xf32, #tpu.memory_space<vmem>>, vector<16x32xf32>
    %c0_1 = arith.constant 0 : index
    %c0_2 = arith.constant 0 : index
    %1 = vector.load %arg2[%c0_1, %c0_2] : memref<1x32xf32, #tpu.memory_space<vmem>>, vector<1x32xf32>
    %c0_3 = arith.constant 0 : index
    %c0_4 = arith.constant 0 : index
    %2 = vector.load %arg3[%c0_3, %c0_4] : memref<1x32xf32, #tpu.memory_space<vmem>>, vector<1x32xf32>
    %cst = arith.constant dense<0.000000e+00> : vector<16xf32>
    %3 = vector.multi_reduction <add>, %0, %cst [1] : vector<16x32xf32> to vector<16xf32>
    %4 = vector.shape_cast %3 : vector<16xf32> to vector<16x1xf32>
    %cst_5 = arith.constant 3.200000e+01 : f32
    %5 = vector.broadcast %cst_5 : f32 to vector<16x1xf32>
    %6 = arith.divf %4, %5 : vector<16x1xf32>
    %7 = vector.broadcast %6 : vector<16x1xf32> to vector<16x32xf32>
    %8 = arith.subf %0, %7 : vector<16x32xf32>
    %9 = arith.mulf %8, %8 : vector<16x32xf32>
    %cst_6 = arith.constant dense<0.000000e+00> : vector<16xf32>
    %10 = vector.multi_reduction <add>, %9, %cst_6 [1] : vector<16x32xf32> to vector<16xf32>
    %11 = vector.shape_cast %10 : vector<16xf32> to vector<16x1xf32>
    %cst_7 = arith.constant 3.200000e+01 : f32
    %12 = vector.broadcast %cst_7 : f32 to vector<16x1xf32>
    %13 = arith.divf %11, %12 : vector<16x1xf32>
    %14 = vector.broadcast %6 : vector<16x1xf32> to vector<16x32xf32>
    %15 = arith.subf %0, %14 : vector<16x32xf32>
    %cst_8 = arith.constant 9.99999974E-6 : f32
    %16 = vector.broadcast %cst_8 : f32 to vector<16x1xf32>
    %17 = arith.addf %13, %16 : vector<16x1xf32>
    %18 = math.rsqrt %17 : vector<16x1xf32>
    %19 = vector.broadcast %18 : vector<16x1xf32> to vector<16x32xf32>
    %20 = arith.mulf %15, %19 : vector<16x32xf32>
    %21 = vector.broadcast %1 : vector<1x32xf32> to vector<16x32xf32>
    %22 = arith.mulf %20, %21 : vector<16x32xf32>
    %23 = vector.broadcast %2 : vector<1x32xf32> to vector<16x32xf32>
    %24 = arith.addf %22, %23 : vector<16x32xf32>
    %c0_9 = arith.constant 0 : index
    %c0_10 = arith.constant 0 : index
    %25 = vector.load %arg4[%c0_9, %c0_10] : memref<32x96xf32, #tpu.memory_space<vmem>>, vector<32x96xf32>
    %cst_11 = arith.constant dense<0.000000e+00> : vector<16x96xf32>
    %26 = tpu.matmul %24, %25, %cst_11 {dimension_numbers = #tpu.dot_dimension_numbers<[1], [0], [0], [1], [0, 0, 1, 1], [], []>} : vector<16x32xf32>, vector<32x96xf32>, vector<16x96xf32> -> vector<16x96xf32>
    %c0_12 = arith.constant 0 : index
    %c0_13 = arith.constant 0 : index
    %27 = vector.load %arg5[%c0_12, %c0_13] : memref<1x96xf32, #tpu.memory_space<vmem>>, vector<1x96xf32>
    %28 = vector.broadcast %27 : vector<1x96xf32> to vector<16x96xf32>
    %29 = arith.addf %26, %28 : vector<16x96xf32>
    %30 = vector.extract_strided_slice %29 {offsets = [0, 0], sizes = [16, 32], strides = [1, 1]} : vector<16x96xf32> to vector<16x32xf32>
    %31 = vector.extract_strided_slice %29 {offsets = [0, 32], sizes = [16, 32], strides = [1, 1]} : vector<16x96xf32> to vector<16x32xf32>
    %32 = vector.extract_strided_slice %29 {offsets = [0, 64], sizes = [16, 32], strides = [1, 1]} : vector<16x96xf32> to vector<16x32xf32>
    %33 = vector.extract_strided_slice %30 {offsets = [0, 0], sizes = [8, 8], strides = [1, 1]} : vector<16x32xf32> to vector<8x8xf32>
    %34 = vector.extract_strided_slice %31 {offsets = [0, 0], sizes = [8, 8], strides = [1, 1]} : vector<16x32xf32> to vector<8x8xf32>
    %35 = vector.extract_strided_slice %32 {offsets = [0, 0], sizes = [8, 8], strides = [1, 1]} : vector<16x32xf32> to vector<8x8xf32>
    %cst_14 = arith.constant dense<0.000000e+00> : vector<8x8xf32>
    %36 = tpu.matmul %33, %34, %cst_14 {dimension_numbers = #tpu.dot_dimension_numbers<[1], [1], [0], [0], [0, 0, 1, 0], [], []>} : vector<8x8xf32>, vector<8x8xf32>, vector<8x8xf32> -> vector<8x8xf32>
    %cst_15 = arith.constant dense<0xFF800000> : vector<8xf32>
    %37 = vector.multi_reduction <maximumf>, %36, %cst_15 [1] : vector<8x8xf32> to vector<8xf32>
    %38 = vector.shape_cast %37 : vector<8xf32> to vector<8x1xf32>
    %39 = vector.broadcast %38 : vector<8x1xf32> to vector<8x8xf32>
    %40 = arith.subf %36, %39 : vector<8x8xf32>
    %41 = math.exp %40 : vector<8x8xf32>
    %cst_16 = arith.constant dense<0.000000e+00> : vector<8xf32>
    %42 = vector.multi_reduction <add>, %41, %cst_16 [1] : vector<8x8xf32> to vector<8xf32>
    %43 = vector.shape_cast %42 : vector<8xf32> to vector<8x1xf32>
    %44 = tpu.reciprocal %43 {approx = true} : vector<8x1xf32> -> vector<8x1xf32>
    %45 = vector.broadcast %44 : vector<8x1xf32> to vector<8x8xf32>
    %46 = arith.mulf %41, %45 : vector<8x8xf32>
    %cst_17 = arith.constant dense<0.000000e+00> : vector<8x8xf32>
    %47 = tpu.matmul %46, %35, %cst_17 {dimension_numbers = #tpu.dot_dimension_numbers<[1], [0], [0], [1], [0, 0, 1, 1], [], []>} : vector<8x8xf32>, vector<8x8xf32>, vector<8x8xf32> -> vector<8x8xf32>
    %c0_18 = arith.constant 0 : index
    %c0_19 = arith.constant 0 : index
    %48 = vector.load %arg15[%c0_18, %c0_19] : memref<16x32xf32, #tpu.memory_space<vmem>>, vector<8x8xf32>
    tpu.vector_store %arg15[%c0_18, %c0_19], %47 {strides = array<i32>} : memref<16x32xf32, #tpu.memory_space<vmem>>, vector<8x8xf32>,
    %49 = vector.extract_strided_slice %30 {offsets = [0, 8], sizes = [8, 8], strides = [1, 1]} : vector<16x32xf32> to vector<8x8xf32>
    %50 = vector.extract_strided_slice %31 {offsets = [0, 8], sizes = [8, 8], strides = [1, 1]} : vector<16x32xf32> to vector<8x8xf32>
    %51 = vector.extract_strided_slice %32 {offsets = [0, 8], sizes = [8, 8], strides = [1, 1]} : vector<16x32xf32> to vector<8x8xf32>
    %cst_20 = arith.constant dense<0.000000e+00> : vector<8x8xf32>
    %52 = tpu.matmul %49, %50, %cst_20 {dimension_numbers = #tpu.dot_dimension_numbers<[1], [1], [0], [0], [0, 0, 1, 0], [], []>} : vector<8x8xf32>, vector<8x8xf32>, vector<8x8xf32> -> vector<8x8xf32>
    %cst_21 = arith.constant dense<0xFF800000> : vector<8xf32>
    %53 = vector.multi_reduction <maximumf>, %52, %cst_21 [1] : vector<8x8xf32> to vector<8xf32>
    %54 = vector.shape_cast %53 : vector<8xf32> to vector<8x1xf32>
    %55 = vector.broadcast %54 : vector<8x1xf32> to vector<8x8xf32>
    %56 = arith.subf %52, %55 : vector<8x8xf32>
    %57 = math.exp %56 : vector<8x8xf32>
    %cst_22 = arith.constant dense<0.000000e+00> : vector<8xf32>
    %58 = vector.multi_reduction <add>, %57, %cst_22 [1] : vector<8x8xf32> to vector<8xf32>
    %59 = vector.shape_cast %58 : vector<8xf32> to vector<8x1xf32>
    %60 = tpu.reciprocal %59 {approx = true} : vector<8x1xf32> -> vector<8x1xf32>
    %61 = vector.broadcast %60 : vector<8x1xf32> to vector<8x8xf32>
    %62 = arith.mulf %57, %61 : vector<8x8xf32>
    %cst_23 = arith.constant dense<0.000000e+00> : vector<8x8xf32>
    %63 = tpu.matmul %62, %51, %cst_23 {dimension_numbers = #tpu.dot_dimension_numbers<[1], [0], [0], [1], [0, 0, 1, 1], [], []>} : vector<8x8xf32>, vector<8x8xf32>, vector<8x8xf32> -> vector<8x8xf32>
    %c0_24 = arith.constant 0 : index
    %c8 = arith.constant 8 : index
    %64 = vector.load %arg15[%c0_24, %c8] : memref<16x32xf32, #tpu.memory_space<vmem>>, vector<8x8xf32>
    tpu.vector_store %arg15[%c0_24, %c8], %63 {strides = array<i32>} : memref<16x32xf32, #tpu.memory_space<vmem>>, vector<8x8xf32>,
    %65 = vector.extract_strided_slice %30 {offsets = [0, 16], sizes = [8, 8], strides = [1, 1]} : vector<16x32xf32> to vector<8x8xf32>
    %66 = vector.extract_strided_slice %31 {offsets = [0, 16], sizes = [8, 8], strides = [1, 1]} : vector<16x32xf32> to vector<8x8xf32>
    %67 = vector.extract_strided_slice %32 {offsets = [0, 16], sizes = [8, 8], strides = [1, 1]} : vector<16x32xf32> to vector<8x8xf32>
    %cst_25 = arith.constant dense<0.000000e+00> : vector<8x8xf32>
    %68 = tpu.matmul %65, %66, %cst_25 {dimension_numbers = #tpu.dot_dimension_numbers<[1], [1], [0], [0], [0, 0, 1, 0], [], []>} : vector<8x8xf32>, vector<8x8xf32>, vector<8x8xf32> -> vector<8x8xf32>
    %cst_26 = arith.constant dense<0xFF800000> : vector<8xf32>
    %69 = vector.multi_reduction <maximumf>, %68, %cst_26 [1] : vector<8x8xf32> to vector<8xf32>
    %70 = vector.shape_cast %69 : vector<8xf32> to vector<8x1xf32>
    %71 = vector.broadcast %70 : vector<8x1xf32> to vector<8x8xf32>
    %72 = arith.subf %68, %71 : vector<8x8xf32>
    %73 = math.exp %72 : vector<8x8xf32>
    %cst_27 = arith.constant dense<0.000000e+00> : vector<8xf32>
    %74 = vector.multi_reduction <add>, %73, %cst_27 [1] : vector<8x8xf32> to vector<8xf32>
    %75 = vector.shape_cast %74 : vector<8xf32> to vector<8x1xf32>
    %76 = tpu.reciprocal %75 {approx = true} : vector<8x1xf32> -> vector<8x1xf32>
    %77 = vector.broadcast %76 : vector<8x1xf32> to vector<8x8xf32>
    %78 = arith.mulf %73, %77 : vector<8x8xf32>
    %cst_28 = arith.constant dense<0.000000e+00> : vector<8x8xf32>
    %79 = tpu.matmul %78, %67, %cst_28 {dimension_numbers = #tpu.dot_dimension_numbers<[1], [0], [0], [1], [0, 0, 1, 1], [], []>} : vector<8x8xf32>, vector<8x8xf32>, vector<8x8xf32> -> vector<8x8xf32>
    %c0_29 = arith.constant 0 : index
    %c16 = arith.constant 16 : index
    %80 = vector.load %arg15[%c0_29, %c16] : memref<16x32xf32, #tpu.memory_space<vmem>>, vector<8x8xf32>
    tpu.vector_store %arg15[%c0_29, %c16], %79 {strides = array<i32>} : memref<16x32xf32, #tpu.memory_space<vmem>>, vector<8x8xf32>,
    %81 = vector.extract_strided_slice %30 {offsets = [0, 24], sizes = [8, 8], strides = [1, 1]} : vector<16x32xf32> to vector<8x8xf32>
    %82 = vector.extract_strided_slice %31 {offsets = [0, 24], sizes = [8, 8], strides = [1, 1]} : vector<16x32xf32> to vector<8x8xf32>
    %83 = vector.extract_strided_slice %32 {offsets = [0, 24], sizes = [8, 8], strides = [1, 1]} : vector<16x32xf32> to vector<8x8xf32>
    %cst_30 = arith.constant dense<0.000000e+00> : vector<8x8xf32>
    %84 = tpu.matmul %81, %82, %cst_30 {dimension_numbers = #tpu.dot_dimension_numbers<[1], [1], [0], [0], [0, 0, 1, 0], [], []>} : vector<8x8xf32>, vector<8x8xf32>, vector<8x8xf32> -> vector<8x8xf32>
    %cst_31 = arith.constant dense<0xFF800000> : vector<8xf32>
    %85 = vector.multi_reduction <maximumf>, %84, %cst_31 [1] : vector<8x8xf32> to vector<8xf32>
    %86 = vector.shape_cast %85 : vector<8xf32> to vector<8x1xf32>
    %87 = vector.broadcast %86 : vector<8x1xf32> to vector<8x8xf32>
    %88 = arith.subf %84, %87 : vector<8x8xf32>
    %89 = math.exp %88 : vector<8x8xf32>
    %cst_32 = arith.constant dense<0.000000e+00> : vector<8xf32>
    %90 = vector.multi_reduction <add>, %89, %cst_32 [1] : vector<8x8xf32> to vector<8xf32>
    %91 = vector.shape_cast %90 : vector<8xf32> to vector<8x1xf32>
    %92 = tpu.reciprocal %91 {approx = true} : vector<8x1xf32> -> vector<8x1xf32>
    %93 = vector.broadcast %92 : vector<8x1xf32> to vector<8x8xf32>
    %94 = arith.mulf %89, %93 : vector<8x8xf32>
    %cst_33 = arith.constant dense<0.000000e+00> : vector<8x8xf32>
    %95 = tpu.matmul %94, %83, %cst_33 {dimension_numbers = #tpu.dot_dimension_numbers<[1], [0], [0], [1], [0, 0, 1, 1], [], []>} : vector<8x8xf32>, vector<8x8xf32>, vector<8x8xf32> -> vector<8x8xf32>
    %c0_34 = arith.constant 0 : index
    %c24 = arith.constant 24 : index
    %96 = vector.load %arg15[%c0_34, %c24] : memref<16x32xf32, #tpu.memory_space<vmem>>, vector<8x8xf32>
    tpu.vector_store %arg15[%c0_34, %c24], %95 {strides = array<i32>} : memref<16x32xf32, #tpu.memory_space<vmem>>, vector<8x8xf32>,
    %97 = vector.extract_strided_slice %30 {offsets = [8, 0], sizes = [8, 8], strides = [1, 1]} : vector<16x32xf32> to vector<8x8xf32>
    %98 = vector.extract_strided_slice %31 {offsets = [8, 0], sizes = [8, 8], strides = [1, 1]} : vector<16x32xf32> to vector<8x8xf32>
    %99 = vector.extract_strided_slice %32 {offsets = [8, 0], sizes = [8, 8], strides = [1, 1]} : vector<16x32xf32> to vector<8x8xf32>
    %cst_35 = arith.constant dense<0.000000e+00> : vector<8x8xf32>
    %100 = tpu.matmul %97, %98, %cst_35 {dimension_numbers = #tpu.dot_dimension_numbers<[1], [1], [0], [0], [0, 0, 1, 0], [], []>} : vector<8x8xf32>, vector<8x8xf32>, vector<8x8xf32> -> vector<8x8xf32>
    %cst_36 = arith.constant dense<0xFF800000> : vector<8xf32>
    %101 = vector.multi_reduction <maximumf>, %100, %cst_36 [1] : vector<8x8xf32> to vector<8xf32>
    %102 = vector.shape_cast %101 : vector<8xf32> to vector<8x1xf32>
    %103 = vector.broadcast %102 : vector<8x1xf32> to vector<8x8xf32>
    %104 = arith.subf %100, %103 : vector<8x8xf32>
    %105 = math.exp %104 : vector<8x8xf32>
    %cst_37 = arith.constant dense<0.000000e+00> : vector<8xf32>
    %106 = vector.multi_reduction <add>, %105, %cst_37 [1] : vector<8x8xf32> to vector<8xf32>
    %107 = vector.shape_cast %106 : vector<8xf32> to vector<8x1xf32>
    %108 = tpu.reciprocal %107 {approx = true} : vector<8x1xf32> -> vector<8x1xf32>
    %109 = vector.broadcast %108 : vector<8x1xf32> to vector<8x8xf32>
    %110 = arith.mulf %105, %109 : vector<8x8xf32>
    %cst_38 = arith.constant dense<0.000000e+00> : vector<8x8xf32>
    %111 = tpu.matmul %110, %99, %cst_38 {dimension_numbers = #tpu.dot_dimension_numbers<[1], [0], [0], [1], [0, 0, 1, 1], [], []>} : vector<8x8xf32>, vector<8x8xf32>, vector<8x8xf32> -> vector<8x8xf32>
    %c8_39 = arith.constant 8 : index
    %c0_40 = arith.constant 0 : index
    %112 = vector.load %arg15[%c8_39, %c0_40] : memref<16x32xf32, #tpu.memory_space<vmem>>, vector<8x8xf32>
    tpu.vector_store %arg15[%c8_39, %c0_40], %111 {strides = array<i32>} : memref<16x32xf32, #tpu.memory_space<vmem>>, vector<8x8xf32>,
    %113 = vector.extract_strided_slice %30 {offsets = [8, 8], sizes = [8, 8], strides = [1, 1]} : vector<16x32xf32> to vector<8x8xf32>
    %114 = vector.extract_strided_slice %31 {offsets = [8, 8], sizes = [8, 8], strides = [1, 1]} : vector<16x32xf32> to vector<8x8xf32>
    %115 = vector.extract_strided_slice %32 {offsets = [8, 8], sizes = [8, 8], strides = [1, 1]} : vector<16x32xf32> to vector<8x8xf32>
    %cst_41 = arith.constant dense<0.000000e+00> : vector<8x8xf32>
    %116 = tpu.matmul %113, %114, %cst_41 {dimension_numbers = #tpu.dot_dimension_numbers<[1], [1], [0], [0], [0, 0, 1, 0], [], []>} : vector<8x8xf32>, vector<8x8xf32>, vector<8x8xf32> -> vector<8x8xf32>
    %cst_42 = arith.constant dense<0xFF800000> : vector<8xf32>
    %117 = vector.multi_reduction <maximumf>, %116, %cst_42 [1] : vector<8x8xf32> to vector<8xf32>
    %118 = vector.shape_cast %117 : vector<8xf32> to vector<8x1xf32>
    %119 = vector.broadcast %118 : vector<8x1xf32> to vector<8x8xf32>
    %120 = arith.subf %116, %119 : vector<8x8xf32>
    %121 = math.exp %120 : vector<8x8xf32>
    %cst_43 = arith.constant dense<0.000000e+00> : vector<8xf32>
    %122 = vector.multi_reduction <add>, %121, %cst_43 [1] : vector<8x8xf32> to vector<8xf32>
    %123 = vector.shape_cast %122 : vector<8xf32> to vector<8x1xf32>
    %124 = tpu.reciprocal %123 {approx = true} : vector<8x1xf32> -> vector<8x1xf32>
    %125 = vector.broadcast %124 : vector<8x1xf32> to vector<8x8xf32>
    %126 = arith.mulf %121, %125 : vector<8x8xf32>
    %cst_44 = arith.constant dense<0.000000e+00> : vector<8x8xf32>
    %127 = tpu.matmul %126, %115, %cst_44 {dimension_numbers = #tpu.dot_dimension_numbers<[1], [0], [0], [1], [0, 0, 1, 1], [], []>} : vector<8x8xf32>, vector<8x8xf32>, vector<8x8xf32> -> vector<8x8xf32>
    %c8_45 = arith.constant 8 : index
    %c8_46 = arith.constant 8 : index
    %128 = vector.load %arg15[%c8_45, %c8_46] : memref<16x32xf32, #tpu.memory_space<vmem>>, vector<8x8xf32>
    tpu.vector_store %arg15[%c8_45, %c8_46], %127 {strides = array<i32>} : memref<16x32xf32, #tpu.memory_space<vmem>>, vector<8x8xf32>,
    %129 = vector.extract_strided_slice %30 {offsets = [8, 16], sizes = [8, 8], strides = [1, 1]} : vector<16x32xf32> to vector<8x8xf32>
    %130 = vector.extract_strided_slice %31 {offsets = [8, 16], sizes = [8, 8], strides = [1, 1]} : vector<16x32xf32> to vector<8x8xf32>
    %131 = vector.extract_strided_slice %32 {offsets = [8, 16], sizes = [8, 8], strides = [1, 1]} : vector<16x32xf32> to vector<8x8xf32>
    %cst_47 = arith.constant dense<0.000000e+00> : vector<8x8xf32>
    %132 = tpu.matmul %129, %130, %cst_47 {dimension_numbers = #tpu.dot_dimension_numbers<[1], [1], [0], [0], [0, 0, 1, 0], [], []>} : vector<8x8xf32>, vector<8x8xf32>, vector<8x8xf32> -> vector<8x8xf32>
    %cst_48 = arith.constant dense<0xFF800000> : vector<8xf32>
    %133 = vector.multi_reduction <maximumf>, %132, %cst_48 [1] : vector<8x8xf32> to vector<8xf32>
    %134 = vector.shape_cast %133 : vector<8xf32> to vector<8x1xf32>
    %135 = vector.broadcast %134 : vector<8x1xf32> to vector<8x8xf32>
    %136 = arith.subf %132, %135 : vector<8x8xf32>
    %137 = math.exp %136 : vector<8x8xf32>
    %cst_49 = arith.constant dense<0.000000e+00> : vector<8xf32>
    %138 = vector.multi_reduction <add>, %137, %cst_49 [1] : vector<8x8xf32> to vector<8xf32>
    %139 = vector.shape_cast %138 : vector<8xf32> to vector<8x1xf32>
    %140 = tpu.reciprocal %139 {approx = true} : vector<8x1xf32> -> vector<8x1xf32>
    %141 = vector.broadcast %140 : vector<8x1xf32> to vector<8x8xf32>
    %142 = arith.mulf %137, %141 : vector<8x8xf32>
    %cst_50 = arith.constant dense<0.000000e+00> : vector<8x8xf32>
    %143 = tpu.matmul %142, %131, %cst_50 {dimension_numbers = #tpu.dot_dimension_numbers<[1], [0], [0], [1], [0, 0, 1, 1], [], []>} : vector<8x8xf32>, vector<8x8xf32>, vector<8x8xf32> -> vector<8x8xf32>
    %c8_51 = arith.constant 8 : index
    %c16_52 = arith.constant 16 : index
    %144 = vector.load %arg15[%c8_51, %c16_52] : memref<16x32xf32, #tpu.memory_space<vmem>>, vector<8x8xf32>
    tpu.vector_store %arg15[%c8_51, %c16_52], %143 {strides = array<i32>} : memref<16x32xf32, #tpu.memory_space<vmem>>, vector<8x8xf32>,
    %145 = vector.extract_strided_slice %30 {offsets = [8, 24], sizes = [8, 8], strides = [1, 1]} : vector<16x32xf32> to vector<8x8xf32>
    %146 = vector.extract_strided_slice %31 {offsets = [8, 24], sizes = [8, 8], strides = [1, 1]} : vector<16x32xf32> to vector<8x8xf32>
    %147 = vector.extract_strided_slice %32 {offsets = [8, 24], sizes = [8, 8], strides = [1, 1]} : vector<16x32xf32> to vector<8x8xf32>
    %cst_53 = arith.constant dense<0.000000e+00> : vector<8x8xf32>
    %148 = tpu.matmul %145, %146, %cst_53 {dimension_numbers = #tpu.dot_dimension_numbers<[1], [1], [0], [0], [0, 0, 1, 0], [], []>} : vector<8x8xf32>, vector<8x8xf32>, vector<8x8xf32> -> vector<8x8xf32>
    %cst_54 = arith.constant dense<0xFF800000> : vector<8xf32>
    %149 = vector.multi_reduction <maximumf>, %148, %cst_54 [1] : vector<8x8xf32> to vector<8xf32>
    %150 = vector.shape_cast %149 : vector<8xf32> to vector<8x1xf32>
    %151 = vector.broadcast %150 : vector<8x1xf32> to vector<8x8xf32>
    %152 = arith.subf %148, %151 : vector<8x8xf32>
    %153 = math.exp %152 : vector<8x8xf32>
    %cst_55 = arith.constant dense<0.000000e+00> : vector<8xf32>
    %154 = vector.multi_reduction <add>, %153, %cst_55 [1] : vector<8x8xf32> to vector<8xf32>
    %155 = vector.shape_cast %154 : vector<8xf32> to vector<8x1xf32>
    %156 = tpu.reciprocal %155 {approx = true} : vector<8x1xf32> -> vector<8x1xf32>
    %157 = vector.broadcast %156 : vector<8x1xf32> to vector<8x8xf32>
    %158 = arith.mulf %153, %157 : vector<8x8xf32>
    %cst_56 = arith.constant dense<0.000000e+00> : vector<8x8xf32>
    %159 = tpu.matmul %158, %147, %cst_56 {dimension_numbers = #tpu.dot_dimension_numbers<[1], [0], [0], [1], [0, 0, 1, 1], [], []>} : vector<8x8xf32>, vector<8x8xf32>, vector<8x8xf32> -> vector<8x8xf32>
    %c8_57 = arith.constant 8 : index
    %c24_58 = arith.constant 24 : index
    %160 = vector.load %arg15[%c8_57, %c24_58] : memref<16x32xf32, #tpu.memory_space<vmem>>, vector<8x8xf32>
    tpu.vector_store %arg15[%c8_57, %c24_58], %159 {strides = array<i32>} : memref<16x32xf32, #tpu.memory_space<vmem>>, vector<8x8xf32>,
    %c0_59 = arith.constant 0 : index
    %c0_60 = arith.constant 0 : index
    %161 = vector.load %arg15[%c0_59, %c0_60] : memref<16x32xf32, #tpu.memory_space<vmem>>, vector<16x32xf32>
    %c0_61 = arith.constant 0 : index
    %c0_62 = arith.constant 0 : index
    %162 = vector.load %arg6[%c0_61, %c0_62] : memref<32x32xf32, #tpu.memory_space<vmem>>, vector<32x32xf32>
    %cst_63 = arith.constant dense<0.000000e+00> : vector<16x32xf32>
    %163 = tpu.matmul %161, %162, %cst_63 {dimension_numbers = #tpu.dot_dimension_numbers<[1], [0], [0], [1], [0, 0, 1, 1], [], []>} : vector<16x32xf32>, vector<32x32xf32>, vector<16x32xf32> -> vector<16x32xf32>
    %c0_64 = arith.constant 0 : index
    %c0_65 = arith.constant 0 : index
    %164 = vector.load %arg7[%c0_64, %c0_65] : memref<1x32xf32, #tpu.memory_space<vmem>>, vector<1x32xf32>
    %165 = vector.broadcast %164 : vector<1x32xf32> to vector<16x32xf32>
    %166 = arith.addf %163, %165 : vector<16x32xf32>
    %167 = arith.addf %0, %166 : vector<16x32xf32>
    %c0_66 = arith.constant 0 : index
    %c0_67 = arith.constant 0 : index
    %168 = vector.load %arg8[%c0_66, %c0_67] : memref<1x32xf32, #tpu.memory_space<vmem>>, vector<1x32xf32>
    %c0_68 = arith.constant 0 : index
    %c0_69 = arith.constant 0 : index
    %169 = vector.load %arg9[%c0_68, %c0_69] : memref<1x32xf32, #tpu.memory_space<vmem>>, vector<1x32xf32>
    %cst_70 = arith.constant dense<0.000000e+00> : vector<16xf32>
    %170 = vector.multi_reduction <add>, %167, %cst_70 [1] : vector<16x32xf32> to vector<16xf32>
    %171 = vector.shape_cast %170 : vector<16xf32> to vector<16x1xf32>
    %cst_71 = arith.constant 3.200000e+01 : f32
    %172 = vector.broadcast %cst_71 : f32 to vector<16x1xf32>
    %173 = arith.divf %171, %172 : vector<16x1xf32>
    %174 = vector.broadcast %173 : vector<16x1xf32> to vector<16x32xf32>
    %175 = arith.subf %167, %174 : vector<16x32xf32>
    %176 = arith.mulf %175, %175 : vector<16x32xf32>
    %cst_72 = arith.constant dense<0.000000e+00> : vector<16xf32>
    %177 = vector.multi_reduction <add>, %176, %cst_72 [1] : vector<16x32xf32> to vector<16xf32>
    %178 = vector.shape_cast %177 : vector<16xf32> to vector<16x1xf32>
    %cst_73 = arith.constant 3.200000e+01 : f32
    %179 = vector.broadcast %cst_73 : f32 to vector<16x1xf32>
    %180 = arith.divf %178, %179 : vector<16x1xf32>
    %181 = vector.broadcast %173 : vector<16x1xf32> to vector<16x32xf32>
    %182 = arith.subf %167, %181 : vector<16x32xf32>
    %cst_74 = arith.constant 9.99999974E-6 : f32
    %183 = vector.broadcast %cst_74 : f32 to vector<16x1xf32>
    %184 = arith.addf %180, %183 : vector<16x1xf32>
    %185 = math.rsqrt %184 : vector<16x1xf32>
    %186 = vector.broadcast %185 : vector<16x1xf32> to vector<16x32xf32>
    %187 = arith.mulf %182, %186 : vector<16x32xf32>
    %188 = vector.broadcast %168 : vector<1x32xf32> to vector<16x32xf32>
    %189 = arith.mulf %187, %188 : vector<16x32xf32>
    %190 = vector.broadcast %169 : vector<1x32xf32> to vector<16x32xf32>
    %191 = arith.addf %189, %190 : vector<16x32xf32>
    %c0_75 = arith.constant 0 : index
    %c0_76 = arith.constant 0 : index
    %192 = vector.load %arg10[%c0_75, %c0_76] : memref<32x128xf32, #tpu.memory_space<vmem>>, vector<32x128xf32>
    %cst_77 = arith.constant dense<0.000000e+00> : vector<16x128xf32>
    %193 = tpu.matmul %191, %192, %cst_77 {dimension_numbers = #tpu.dot_dimension_numbers<[1], [0], [0], [1], [0, 0, 1, 1], [], []>} : vector<16x32xf32>, vector<32x128xf32>, vector<16x128xf32> -> vector<16x128xf32>
    %c0_78 = arith.constant 0 : index
    %c0_79 = arith.constant 0 : index
    %194 = vector.load %arg11[%c0_78, %c0_79] : memref<1x128xf32, #tpu.memory_space<vmem>>, vector<1x128xf32>
    %195 = vector.broadcast %194 : vector<1x128xf32> to vector<16x128xf32>
    %196 = arith.addf %193, %195 : vector<16x128xf32>
    %cst_80 = arith.constant 5.000000e-01 : f32
    %197 = vector.broadcast %cst_80 : f32 to vector<16x128xf32>
    %198 = arith.mulf %197, %196 : vector<16x128xf32>
    %cst_81 = arith.constant 0.707106769 : f32
    %199 = vector.broadcast %cst_81 : f32 to vector<16x128xf32>
    %200 = arith.mulf %196, %199 : vector<16x128xf32>
    %201 = math.absf %200 : vector<16x128xf32>
    %cst_82 = arith.constant 0.327591091 : f32
    %202 = vector.broadcast %cst_82 : f32 to vector<16x128xf32>
    %203 = arith.mulf %202, %201 : vector<16x128xf32>
    %cst_83 = arith.constant 1.000000e+00 : f32
    %204 = vector.broadcast %cst_83 : f32 to vector<16x128xf32>
    %205 = arith.addf %204, %203 : vector<16x128xf32>
    %cst_84 = arith.constant 1.000000e+00 : f32
    %206 = vector.broadcast %cst_84 : f32 to vector<16x128xf32>
    %207 = arith.divf %206, %205 : vector<16x128xf32>
    %cst_85 = arith.constant 1.06140542 : f32
    %208 = vector.broadcast %cst_85 : f32 to vector<16x128xf32>
    %209 = arith.mulf %208, %207 : vector<16x128xf32>
    %cst_86 = arith.constant -1.45315206 : f32
    %210 = vector.broadcast %cst_86 : f32 to vector<16x128xf32>
    %211 = arith.addf %209, %210 : vector<16x128xf32>
    %212 = arith.mulf %211, %207 : vector<16x128xf32>
    %cst_87 = arith.constant 1.42141378 : f32
    %213 = vector.broadcast %cst_87 : f32 to vector<16x128xf32>
    %214 = arith.addf %212, %213 : vector<16x128xf32>
    %215 = arith.mulf %214, %207 : vector<16x128xf32>
    %cst_88 = arith.constant -0.284496725 : f32
    %216 = vector.broadcast %cst_88 : f32 to vector<16x128xf32>
    %217 = arith.addf %215, %216 : vector<16x128xf32>
    %218 = arith.mulf %217, %207 : vector<16x128xf32>
    %cst_89 = arith.constant 0.254829586 : f32
    %219 = vector.broadcast %cst_89 : f32 to vector<16x128xf32>
    %220 = arith.addf %218, %219 : vector<16x128xf32>
    %221 = arith.mulf %220, %207 : vector<16x128xf32>
    %cst_90 = arith.constant 0.000000e+00 : f32
    %222 = vector.broadcast %cst_90 : f32 to vector<16x128xf32>
    %223 = arith.subf %222, %201 : vector<16x128xf32>
    %224 = arith.mulf %223, %201 : vector<16x128xf32>
    %225 = math.exp %224 : vector<16x128xf32>
    %226 = arith.mulf %221, %225 : vector<16x128xf32>
    %cst_91 = arith.constant 1.000000e+00 : f32
    %227 = vector.broadcast %cst_91 : f32 to vector<16x128xf32>
    %228 = arith.subf %227, %226 : vector<16x128xf32>
    %cst_92 = arith.constant 0.000000e+00 : f32
    %229 = vector.broadcast %cst_92 : f32 to vector<16x128xf32>
    %230 = arith.cmpf olt, %200, %229 : vector<16x128xf32>
    %cst_93 = arith.constant 0.000000e+00 : f32
    %231 = vector.broadcast %cst_93 : f32 to vector<16x128xf32>
    %232 = arith.subf %231, %228 : vector<16x128xf32>
    %233 = arith.select %230, %232, %228 : vector<16x128xi1>, vector<16x128xf32>
    %cst_94 = arith.constant 1.000000e+00 : f32
    %234 = vector.broadcast %cst_94 : f32 to vector<16x128xf32>
    %235 = arith.addf %234, %233 : vector<16x128xf32>
    %236 = arith.mulf %198, %235 : vector<16x128xf32>
    %c0_95 = arith.constant 0 : index
    %c0_96 = arith.constant 0 : index
    %237 = vector.load %arg12[%c0_95, %c0_96] : memref<128x32xf32, #tpu.memory_space<vmem>>, vector<128x32xf32>
    %cst_97 = arith.constant dense<0.000000e+00> : vector<16x32xf32>
    %238 = tpu.matmul %236, %237, %cst_97 {dimension_numbers = #tpu.dot_dimension_numbers<[1], [0], [0], [1], [0, 0, 1, 1], [], []>} : vector<16x128xf32>, vector<128x32xf32>, vector<16x32xf32> -> vector<16x32xf32>
    %c0_98 = arith.constant 0 : index
    %c0_99 = arith.constant 0 : index
    %239 = vector.load %arg13[%c0_98, %c0_99] : memref<1x32xf32, #tpu.memory_space<vmem>>, vector<1x32xf32>
    %240 = vector.broadcast %239 : vector<1x32xf32> to vector<16x32xf32>
    %241 = arith.addf %238, %240 : vector<16x32xf32>
    %242 = arith.addf %167, %241 : vector<16x32xf32>
    %c0_100 = arith.constant 0 : index
    %c0_101 = arith.constant 0 : index
    %243 = vector.load %arg14[%c0_100, %c0_101] : memref<16x32xf32, #tpu.memory_space<vmem>>, vector<16x32xf32>
    tpu.vector_store %arg14[%c0_100, %c0_101], %242 {strides = array<i32>} : memref<16x32xf32, #tpu.memory_space<vmem>>, vector<16x32xf32>,
    return
  }
  func.func @transform_0(%arg0: i32) -> (i32, i32) {
    %c0_i32 = arith.constant 0 : i32
    %c0_i32_0 = arith.constant 0 : i32
    %c0_i32_1 = arith.constant 0 : i32
    return %c0_i32, %c0_i32_0 : i32, i32
  }
  func.func @transform_1(%arg0: i32) -> (i32, i32) {
    %c0_i32 = arith.constant 0 : i32
    %c0_i32_0 = arith.constant 0 : i32
    %c0_i32_1 = arith.constant 0 : i32
    return %c0_i32, %c0_i32_0 : i32, i32
  }
  func.func @transform_2(%arg0: i32) -> (i32, i32) {
    %c0_i32 = arith.constant 0 : i32
    %c0_i32_0 = arith.constant 0 : i32
    %c0_i32_1 = arith.constant 0 : i32
    return %c0_i32, %c0_i32_0 : i32, i32
  }
  func.func @transform_3(%arg0: i32) -> (i32, i32) {
    %c0_i32 = arith.constant 0 : i32
    %c0_i32_0 = arith.constant 0 : i32
    %c0_i32_1 = arith.constant 0 : i32
    return %c0_i32, %c0_i32_0 : i32, i32
  }
  func.func @transform_4(%arg0: i32) -> (i32, i32) {
    %c0_i32 = arith.constant 0 : i32
    %c0_i32_0 = arith.constant 0 : i32
    %c0_i32_1 = arith.constant 0 : i32
    return %c0_i32, %c0_i32_0 : i32, i32
  }
  func.func @transform_5(%arg0: i32) -> (i32, i32) {
    %c0_i32 = arith.constant 0 : i32
    %c0_i32_0 = arith.constant 0 : i32
    %c0_i32_1 = arith.constant 0 : i32
    return %c0_i32, %c0_i32_0 : i32, i32
  }
  func.func @transform_6(%arg0: i32) -> (i32, i32) {
    %c0_i32 = arith.constant 0 : i32
    %c0_i32_0 = arith.constant 0 : i32
    %c0_i32_1 = arith.constant 0 : i32
    return %c0_i32, %c0_i32_0 : i32, i32
  }
  func.func @transform_7(%arg0: i32) -> (i32, i32) {
    %c0_i32 = arith.constant 0 : i32
    %c0_i32_0 = arith.constant 0 : i32
    %c0_i32_1 = arith.constant 0 : i32
    return %c0_i32, %c0_i32_0 : i32, i32
  }
  func.func @transform_8(%arg0: i32) -> (i32, i32) {
    %c0_i32 = arith.constant 0 : i32
    %c0_i32_0 = arith.constant 0 : i32
    %c0_i32_1 = arith.constant 0 : i32
    return %c0_i32, %c0_i32_0 : i32, i32
  }
  func.func @transform_9(%arg0: i32) -> (i32, i32) {
    %c0_i32 = arith.constant 0 : i32
    %c0_i32_0 = arith.constant 0 : i32
    %c0_i32_1 = arith.constant 0 : i32
    return %c0_i32, %c0_i32_0 : i32, i32
  }
  func.func @transform_10(%arg0: i32) -> (i32, i32) {
    %c0_i32 = arith.constant 0 : i32
    %c0_i32_0 = arith.constant 0 : i32
    %c0_i32_1 = arith.constant 0 : i32
    return %c0_i32, %c0_i32_0 : i32, i32
  }
  func.func @transform_11(%arg0: i32) -> (i32, i32) {
    %c0_i32 = arith.constant 0 : i32
    %c0_i32_0 = arith.constant 0 : i32
    %c0_i32_1 = arith.constant 0 : i32
    return %c0_i32, %c0_i32_0 : i32, i32
  }
  func.func @transform_12(%arg0: i32) -> (i32, i32) {
    %c0_i32 = arith.constant 0 : i32
    %c0_i32_0 = arith.constant 0 : i32
    %c0_i32_1 = arith.constant 0 : i32
    return %c0_i32, %c0_i32_0 : i32, i32
  }
  func.func @transform_13(%arg0: i32) -> (i32, i32) {
    %c0_i32 = arith.constant 0 : i32
    %c0_i32_0 = arith.constant 0 : i32
    %c0_i32_1 = arith.constant 0 : i32
    return %c0_i32, %c0_i32_0 : i32, i32
  }
}

</mosaic_0001>

<llo_original>
// kernel: tpu_custom_call.1
$region0: #{tpu_custom_call.1}
  #allocation0 [shape = 'u32[]', space=smem, size = 0x4, offset = 0x4, fixed_abs, tag = 'smem constant byte address 0x4 - core index']
  #allocation1 [shape = 'u32[144,128]{1,0:T(1,128)}', space=vmem, size = 0x12000, scoped, tag = 'internal scratch']
  #allocation2 [shape = 'f32[16,32]{1,0:T(8,128)}', space=vmem, size = 0x2000, scoped, tag = 'scratch operand']
  %s0 = inlined_call_operand.vmem [shape: f32[16,32], index: 0, kind: input, shape index: {}]
  %s1 = inlined_call_operand.vmem [shape: f32[1,32], index: 1, kind: input, shape index: {}]
  %s2 = inlined_call_operand.vmem [shape: f32[1,32], index: 2, kind: input, shape index: {}]
  %s3 = inlined_call_operand.vmem [shape: f32[32,96], index: 3, kind: input, shape index: {}]
  %s4 = inlined_call_operand.vmem [shape: f32[1,96], index: 4, kind: input, shape index: {}]
  %s5 = inlined_call_operand.vmem [shape: f32[32,32], index: 5, kind: input, shape index: {}]
  %s6 = inlined_call_operand.vmem [shape: f32[1,32], index: 6, kind: input, shape index: {}]
  %s7 = inlined_call_operand.vmem [shape: f32[1,32], index: 7, kind: input, shape index: {}]
  %s8 = inlined_call_operand.vmem [shape: f32[1,32], index: 8, kind: input, shape index: {}]
  %s9 = inlined_call_operand.vmem [shape: f32[32,128], index: 9, kind: input, shape index: {}]
  %s10 = inlined_call_operand.vmem [shape: f32[1,128], index: 10, kind: input, shape index: {}]
  %s11 = inlined_call_operand.vmem [shape: f32[128,32], index: 11, kind: input, shape index: {}]
  %s12 = inlined_call_operand.vmem [shape: f32[1,32], index: 12, kind: input, shape index: {}]
  %s13 = inlined_call_operand.hbm [shape: f32[16,32], index: 13, kind: output, shape index: {}]
  %s14 = sld [smem:[#allocation0]]
  $region62: #{tpu_custom_call.1} parent=0
    _
  %s16 = ssub.s32 1, %s14
  %s17 = scalar_select 0, %s16, %s14
  $region1: #{tpu_custom_call.1} parent=0
    #allocation3 [shape = 'u8[8192]{0}', space=vmem, size = 0x2000, scoped, tag = 'output window, operand 0, single buffered']
    #allocation4 [shape = 's32[1]{0}', space=sflag, size = 0x4, scoped, tag = 'scoped memory for tpu_custom_call.1']
    %18 = vsyncpa [#allocation4], 0
    // Predicated region
    $region2: #{tpu_custom_call.1} parent=1 // pred_check
      _
    $region3: #{tpu_custom_call.1} parent=1 // pred_check_branch
      %20 = sbr.rel (0) target = $region5
    $region4: #{tpu_custom_call.1} parent=1 // pred_region
      _
    $region5: #{tpu_custom_call.1} parent=1 // pred_fallthru
      _
    // Predicated region
    $region6: #{tpu_custom_call.1} parent=1 // pred_check
      _
    $region7: #{tpu_custom_call.1} parent=1 // pred_check_branch
      %22 = sbr.rel (0) target = $region9
    $region8: #{tpu_custom_call.1} parent=1 // pred_region
      _
    $region9: #{tpu_custom_call.1} parent=1 // pred_fallthru
      _
    // Predicated region
    $region10: #{tpu_custom_call.1} parent=1 // pred_check
      _
    $region11: #{tpu_custom_call.1} parent=1 // pred_check_branch
      %24 = sbr.rel (0) target = $region13
    $region12: #{tpu_custom_call.1} parent=1 // pred_region
      _
    $region13: #{tpu_custom_call.1} parent=1 // pred_fallthru
      _
    // Predicated region
    $region14: #{tpu_custom_call.1} parent=1 // pred_check
      _
    $region15: #{tpu_custom_call.1} parent=1 // pred_check_branch
      %26 = sbr.rel (0) target = $region17
    $region16: #{tpu_custom_call.1} parent=1 // pred_region
      _
    $region17: #{tpu_custom_call.1} parent=1 // pred_fallthru
      _
    // Predicated region
    $region18: #{tpu_custom_call.1} parent=1 // pred_check
      _
    $region19: #{tpu_custom_call.1} parent=1 // pred_check_branch
      %28 = sbr.rel (0) target = $region21
    $region20: #{tpu_custom_call.1} parent=1 // pred_region
      _
    $region21: #{tpu_custom_call.1} parent=1 // pred_fallthru
      _
    // Predicated region
    $region22: #{tpu_custom_call.1} parent=1 // pred_check
      _
    $region23: #{tpu_custom_call.1} parent=1 // pred_check_branch
      %30 = sbr.rel (0) target = $region25
    $region24: #{tpu_custom_call.1} parent=1 // pred_region
      _
    $region25: #{tpu_custom_call.1} parent=1 // pred_fallthru
      _
    // Predicated region
    $region26: #{tpu_custom_call.1} parent=1 // pred_check
      _
    $region27: #{tpu_custom_call.1} parent=1 // pred_check_branch
      %32 = sbr.rel (0) target = $region29
    $region28: #{tpu_custom_call.1} parent=1 // pred_region
      _
    $region29: #{tpu_custom_call.1} parent=1 // pred_fallthru
      _
    // Predicated region
    $region30: #{tpu_custom_call.1} parent=1 // pred_check
      _
    $region31: #{tpu_custom_call.1} parent=1 // pred_check_branch
      %34 = sbr.rel (0) target = $region33
    $region32: #{tpu_custom_call.1} parent=1 // pred_region
      _
    $region33: #{tpu_custom_call.1} parent=1 // pred_fallthru
      _
    // Predicated region
    $region34: #{tpu_custom_call.1} parent=1 // pred_check
      _
    $region35: #{tpu_custom_call.1} parent=1 // pred_check_branch
      %36 = sbr.rel (0) target = $region37
    $region36: #{tpu_custom_call.1} parent=1 // pred_region
      _
    $region37: #{tpu_custom_call.1} parent=1 // pred_fallthru
      _
    // Predicated region
    $region38: #{tpu_custom_call.1} parent=1 // pred_check
      _
    $region39: #{tpu_custom_call.1} parent=1 // pred_check_branch
      %38 = sbr.rel (0) target = $region41
    $region40: #{tpu_custom_call.1} parent=1 // pred_region
      _
    $region41: #{tpu_custom_call.1} parent=1 // pred_fallthru
      _
    // Predicated region
    $region42: #{tpu_custom_call.1} parent=1 // pred_check
      _
    $region43: #{tpu_custom_call.1} parent=1 // pred_check_branch
      %40 = sbr.rel (0) target = $region45
    $region44: #{tpu_custom_call.1} parent=1 // pred_region
      _
    $region45: #{tpu_custom_call.1} parent=1 // pred_fallthru
      _
    // Predicated region
    $region46: #{tpu_custom_call.1} parent=1 // pred_check
      _
    $region47: #{tpu_custom_call.1} parent=1 // pred_check_branch
      %42 = sbr.rel (0) target = $region49
    $region48: #{tpu_custom_call.1} parent=1 // pred_region
      _
    $region49: #{tpu_custom_call.1} parent=1 // pred_fallthru
      _
    // Predicated region
    $region50: #{tpu_custom_call.1} parent=1 // pred_check
      _
    $region51: #{tpu_custom_call.1} parent=1 // pred_check_branch
      %44 = sbr.rel (0) target = $region53
    $region52: #{tpu_custom_call.1} parent=1 // pred_region
      _
    $region53: #{tpu_custom_call.1} parent=1 // pred_fallthru
      _
    %v45 = vld [vmem:[%s0] sm:$0xff]
    %v46 = vld [vmem:[%s0 + $0x8] sm:$0xff]
    %v47 = vld [vmem:[%s1] sm:$0x1]
    %v48 = vld [vmem:[%s2] sm:$0x1]
    %vm49 = vcmask 261120
    %v50 = vsel %vm49, %v45, 0.0
    %51 = vadd.xlane.f32.xlu0 %v50
    %v52 = vpop.xlane.xlu0 %51
    %v53 = vsel %vm49, %v46, 0.0
    %54 = vadd.xlane.f32.xlu0 %v53
    %v55 = vpop.xlane.xlu0 %54
    %v56 = vrcp.pop 32.0
    %v57 = vmul.f32 %v52, %v56
    %v58 = vmul.f32 %v55, %v56
    %v59 = vsub.f32 %v45, %v57
    %v60 = vsub.f32 %v46, %v58
    %v61 = vmul.f32 %v59, %v59
    %v62 = vmul.f32 %v60, %v60
    %v63 = vsel %vm49, %v61, 0.0
    %64 = vadd.xlane.f32.xlu0 %v63
    %v65 = vpop.xlane.xlu0 %64
    %v66 = vsel %vm49, %v62, 0.0
    %67 = vadd.xlane.f32.xlu0 %v66
    %v68 = vpop.xlane.xlu0 %67
    %v69 = vmul.f32 %v65, %v56
    %v70 = vmul.f32 %v68, %v56
    %v71 = vadd.f32 %v69, 1e-05
    %v72 = vadd.f32 %v70, 1e-05
    %v73 = vrsqrt.pop %v71
    %v74 = vrsqrt.pop %v72
    %v75 = vmul.f32 %v59, %v73
    %v76 = vmul.f32 %v60, %v74
    %v78 = vlaneseq
    %v79 = vshrl.u32 %v78, 7
    %v80 = vsub.s32 0, %v79
    %v81 = vrot.slane %v47, %v80
    %v83 = vmul.f32 %v75, %v81
    %v84 = vmul.f32 %v76, %v81
    %v86 = vlaneseq
    %v87 = vshrl.u32 %v86, 7
    %v88 = vsub.s32 0, %v87
    %v89 = vrot.slane %v48, %v88
    %v91 = vadd.f32 %v83, %v89
    %v92 = vadd.f32 %v84, %v89
    %v93 = vld [vmem:[%s3] sm:$0xff]
    %v94 = vld [vmem:[%s3 + $0x8] sm:$0xff]
    %v95 = vld [vmem:[%s3 + $0x10] sm:$0xff]
    %v96 = vld [vmem:[%s3 + $0x18] sm:$0xff]
    %v97 = vld [vmem:[%s4] sm:$0x1]
    %v99 = vlaneseq
    %v100 = vshrl.u32 %v99, 7
    %v101 = vsub.s32 0, %v100
    %v102 = vrot.slane %v97, %v101
    %v105 = vsel %vm49, %v91, 0
    %v108 = vsel %vm49, %v92, 0
    %110 = vmatprep.subr.mxu0 0.0
    %111 = vmatpush1.msra.mxu0 0.0
    %112 = vmatprep.subr.mxu0 0.0
    %113 = vmatpush1.msra.mxu0 0.0
    %114 = vmatprep.subr.mxu0 0.0
    %115 = vmatpush1.msra.mxu0 0.0
    %116 = vmatprep.subr.mxu0 0.0
    %117 = vmatpush1.msra.mxu0 0.0
    %118 = vmatprep.subr.mxu0 0.0
    %119 = vmatpush1.msra.mxu0 0.0
    %120 = vmatprep.subr.mxu0 0.0
    %121 = vmatpush1.msra.mxu0 0.0
    %122 = vmatprep.subr.mxu0 0.0
    %123 = vmatpush1.msra.mxu0 0.0
    %124 = vmatprep.subr.mxu0 0.0
    %125 = vmatpush1.msra.mxu0 0.0
    %126 = vmatprep.subr.mxu0 0.0
    %127 = vmatpush1.msra.mxu0 0.0
    %128 = vmatprep.subr.mxu0 0.0
    %129 = vmatpush1.msra.mxu0 0.0
    %130 = vmatprep.subr.mxu0 0.0
    %131 = vmatpush1.msra.mxu0 0.0
    %132 = vmatprep.subr.mxu0 0.0
    %133 = vmatpush1.msra.mxu0 0.0
    %134 = vmatprep.subr.mxu0 0.0
    %135 = vmatpush1.msra.mxu0 %v96
    %136 = vmatprep.subr.mxu0 0.0
    %137 = vmatpush1.msra.mxu0 %v95
    %138 = vmatprep.subr.mxu0 0.0
    %139 = vmatpush1.msra.mxu0 %v94
    %140 = vmatprep.subr.mxu0 0.0
    %141 = vmatpush1.msra.mxu0 %v93
    %142 = vmatprep.subr.mxu0 0.0
    %143 = vmatpush2.msra.mxu0 0.0
    %144 = vmatprep.subr.mxu0 0.0
    %145 = vmatpush2.msra.mxu0 0.0
    %146 = vmatprep.subr.mxu0 0.0
    %147 = vmatpush2.msra.mxu0 0.0
    %148 = vmatprep.subr.mxu0 0.0
    %149 = vmatpush2.msra.mxu0 0.0
    %150 = vmatprep.subr.mxu0 0.0
    %151 = vmatpush2.msra.mxu0 0.0
    %152 = vmatprep.subr.mxu0 0.0
    %153 = vmatpush2.msra.mxu0 0.0
    %154 = vmatprep.subr.mxu0 0.0
    %155 = vmatpush2.msra.mxu0 0.0
    %156 = vmatprep.subr.mxu0 0.0
    %157 = vmatpush2.msra.mxu0 0.0
    %158 = vmatprep.subr.mxu0 0.0
    %159 = vmatpush2.msra.mxu0 0.0
    %160 = vmatprep.subr.mxu0 0.0
    %161 = vmatpush2.msra.mxu0 0.0
    %162 = vmatprep.subr.mxu0 0.0
    %163 = vmatpush2.msra.mxu0 0.0
    %164 = vmatprep.subr.mxu0 0.0
    %165 = vmatpush2.msra.mxu0 0.0
    %166 = vmatprep.subr.mxu0 0.0
    %167 = vmatpush2.msra.mxu0 0.0
    %168 = vmatprep.subr.mxu0 0.0
    %169 = vmatpush2.msra.mxu0 0.0
    %170 = vmatprep.subr.mxu0 0.0
    %171 = vmatpush2.msra.mxu0 0.0
    %172 = vmatprep.subr.mxu0 0.0
    %173 = vmatpush2.msra.mxu0 0.0
    %174 = vmatprep.mubr.f32.mxu0 0.0
    %175 = vmatmul.mubr.f32.gmra.mxu0 %v105
    %v176 = vpop.f32.mrf.mxu0
    %v177 = vadd.f32 %v102, %v176
    %v178 = vpop.f32.mrf.mxu0
    %179 = vmatprep.mubr.f32.mxu0 0.0
    %180 = vmatmul.mubr.f32.gmra.mxu0 %v108
    %v181 = vpop.f32.mrf.mxu0
    %v182 = vadd.f32 %v102, %v181
    %v183 = vpop.f32.mrf.mxu0
    %184 = vdwg.mxu0
    %186 = vrot.lane.b32.xlu0 %v177, 96
    %v187 = vpop.permute.xlu0 %186
    %vm188 = vcmask 64512
    %v189 = vsel %vm188, %v177, 0
    %v191 = vsel %vm188, %v187, 0
    %193 = vmatprep.subr.mxu0 0.0
    %194 = vmatpush1.xpose.msra.mxu0 0.0
    %195 = vmatprep.subr.mxu0 0.0
    %196 = vmatpush1.xpose.msra.mxu0 0.0
    %197 = vmatprep.subr.mxu0 0.0
    %198 = vmatpush1.xpose.msra.mxu0 0.0
    %199 = vmatprep.subr.mxu0 0.0
    %200 = vmatpush1.xpose.msra.mxu0 0.0
    %201 = vmatprep.subr.mxu0 0.0
    %202 = vmatpush1.xpose.msra.mxu0 0.0
    %203 = vmatprep.subr.mxu0 0.0
    %204 = vmatpush1.xpose.msra.mxu0 0.0
    %205 = vmatprep.subr.mxu0 0.0
    %206 = vmatpush1.xpose.msra.mxu0 0.0
    %207 = vmatprep.subr.mxu0 0.0
    %208 = vmatpush1.xpose.msra.mxu0 0.0
    %209 = vmatprep.subr.mxu0 0.0
    %210 = vmatpush1.xpose.msra.mxu0 0.0
    %211 = vmatprep.subr.mxu0 0.0
    %212 = vmatpush1.xpose.msra.mxu0 0.0
    %213 = vmatprep.subr.mxu0 0.0
    %214 = vmatpush1.xpose.msra.mxu0 0.0
    %215 = vmatprep.subr.mxu0 0.0
    %216 = vmatpush1.xpose.msra.mxu0 0.0
    %217 = vmatprep.subr.mxu0 0.0
    %218 = vmatpush1.xpose.msra.mxu0 0.0
    %219 = vmatprep.subr.mxu0 0.0
    %220 = vmatpush1.xpose.msra.mxu0 0.0
    %221 = vmatprep.subr.mxu0 0.0
    %222 = vmatpush1.xpose.msra.mxu0 0.0
    %223 = vmatprep.subr.mxu0 0.0
    %224 = vmatpush1.xpose.msra.mxu0 %v191
    %225 = vmatprep.subr.mxu0 0.0
    %226 = vmatpush2.xpose.msra.mxu0 0.0
    %227 = vmatprep.subr.mxu0 0.0
    %228 = vmatpush2.xpose.msra.mxu0 0.0
    %229 = vmatprep.subr.mxu0 0.0
    %230 = vmatpush2.xpose.msra.mxu0 0.0
    %231 = vmatprep.subr.mxu0 0.0
    %232 = vmatpush2.xpose.msra.mxu0 0.0
    %233 = vmatprep.subr.mxu0 0.0
    %234 = vmatpush2.xpose.msra.mxu0 0.0
    %235 = vmatprep.subr.mxu0 0.0
    %236 = vmatpush2.xpose.msra.mxu0 0.0
    %237 = vmatprep.subr.mxu0 0.0
    %238 = vmatpush2.xpose.msra.mxu0 0.0
    %239 = vmatprep.subr.mxu0 0.0
    %240 = vmatpush2.xpose.msra.mxu0 0.0
    %241 = vmatprep.subr.mxu0 0.0
    %242 = vmatpush2.xpose.msra.mxu0 0.0
    %243 = vmatprep.subr.mxu0 0.0
    %244 = vmatpush2.xpose.msra.mxu0 0.0
    %245 = vmatprep.subr.mxu0 0.0
    %246 = vmatpush2.xpose.msra.mxu0 0.0
    %247 = vmatprep.subr.mxu0 0.0
    %248 = vmatpush2.xpose.msra.mxu0 0.0
    %249 = vmatprep.subr.mxu0 0.0
    %250 = vmatpush2.xpose.msra.mxu0 0.0
    %251 = vmatprep.subr.mxu0 0.0
    %252 = vmatpush2.xpose.msra.mxu0 0.0
    %253 = vmatprep.subr.mxu0 0.0
    %254 = vmatpush2.xpose.msra.mxu0 0.0
    %255 = vmatprep.subr.mxu0 0.0
    %256 = vmatpush2.xpose.msra.mxu0 0.0
    %257 = vmatprep.mubr.f32.mxu0 0.0
    %258 = vmatmul.mubr.f32.gmra.mxu0 %v189
    %v259 = vpop.f32.mrf.mxu0
    %v260 = vadd.f32 0.0, %v259
    %v261 = vpop.f32.mrf.mxu0
    %262 = vdwg.mxu0
    %v263 = vsel %vm188, %v260, -inf
    %264 = vmax.xlane.f32.xlu0 %v263
    %v265 = vpop.xlane.xlu0 %264
    %v266 = vsub.f32 %v260, %v265
    %v267 = vmul.f32 %v266, 1.442695
    %v268 = vpow.pop %v267
    %v269 = vsel %vm188, %v268, 0.0
    %270 = vadd.xlane.f32.xlu0 %v269
    %v271 = vpop.xlane.xlu0 %270
    %v272 = vrcp.pop %v271
    %v273 = vmul.f32 %v268, %v272
    %274 = vrot.lane.b32.xlu0 %v177, 64
    %v275 = vpop.permute.xlu0 %274
    %v278 = vsel %vm188, %v273, 0
    %280 = vmatprep.subr.mxu0 0.0
    %281 = vmatpush1.msra.mxu0 0.0
    %282 = vmatprep.subr.mxu0 0.0
    %283 = vmatpush1.msra.mxu0 0.0
    %284 = vmatprep.subr.mxu0 0.0
    %285 = vmatpush1.msra.mxu0 0.0
    %286 = vmatprep.subr.mxu0 0.0
    %287 = vmatpush1.msra.mxu0 0.0
    %288 = vmatprep.subr.mxu0 0.0
    %289 = vmatpush1.msra.mxu0 0.0
    %290 = vmatprep.subr.mxu0 0.0
    %291 = vmatpush1.msra.mxu0 0.0
    %292 = vmatprep.subr.mxu0 0.0
    %293 = vmatpush1.msra.mxu0 0.0
    %294 = vmatprep.subr.mxu0 0.0
    %295 = vmatpush1.msra.mxu0 0.0
    %296 = vmatprep.subr.mxu0 0.0
    %297 = vmatpush1.msra.mxu0 0.0
    %298 = vmatprep.subr.mxu0 0.0
    %299 = vmatpush1.msra.mxu0 0.0
    %300 = vmatprep.subr.mxu0 0.0
    %301 = vmatpush1.msra.mxu0 0.0
    %302 = vmatprep.subr.mxu0 0.0
    %303 = vmatpush1.msra.mxu0 0.0
    %304 = vmatprep.subr.mxu0 0.0
    %305 = vmatpush1.msra.mxu0 0.0
    %306 = vmatprep.subr.mxu0 0.0
    %307 = vmatpush1.msra.mxu0 0.0
    %308 = vmatprep.subr.mxu0 0.0
    %309 = vmatpush1.msra.mxu0 0.0
    %310 = vmatprep.subr.mxu0 0.0
    %311 = vmatpush1.msra.mxu0 %v275
    %312 = vmatprep.subr.mxu0 0.0
    %313 = vmatpush2.msra.mxu0 0.0
    %314 = vmatprep.subr.mxu0 0.0
    %315 = vmatpush2.msra.mxu0 0.0
    %316 = vmatprep.subr.mxu0 0.0
    %317 = vmatpush2.msra.mxu0 0.0
    %318 = vmatprep.subr.mxu0 0.0
    %319 = vmatpush2.msra.mxu0 0.0
    %320 = vmatprep.subr.mxu0 0.0
    %321 = vmatpush2.msra.mxu0 0.0
    %322 = vmatprep.subr.mxu0 0.0
    %323 = vmatpush2.msra.mxu0 0.0
    %324 = vmatprep.subr.mxu0 0.0
    %325 = vmatpush2.msra.mxu0 0.0
    %326 = vmatprep.subr.mxu0 0.0
    %327 = vmatpush2.msra.mxu0 0.0
    %328 = vmatprep.subr.mxu0 0.0
    %329 = vmatpush2.msra.mxu0 0.0
    %330 = vmatprep.subr.mxu0 0.0
    %331 = vmatpush2.msra.mxu0 0.0
    %332 = vmatprep.subr.mxu0 0.0
    %333 = vmatpush2.msra.mxu0 0.0
    %334 = vmatprep.subr.mxu0 0.0
    %335 = vmatpush2.msra.mxu0 0.0
    %336 = vmatprep.subr.mxu0 0.0
    %337 = vmatpush2.msra.mxu0 0.0
    %338 = vmatprep.subr.mxu0 0.0
    %339 = vmatpush2.msra.mxu0 0.0
    %340 = vmatprep.subr.mxu0 0.0
    %341 = vmatpush2.msra.mxu0 0.0
    %342 = vmatprep.subr.mxu0 0.0
    %343 = vmatpush2.msra.mxu0 0.0
    %344 = vmatprep.mubr.f32.mxu0 0.0
    %345 = vmatmul.mubr.f32.gmra.mxu0 %v278
    %v346 = vpop.f32.mrf.mxu0
    %v347 = vadd.f32 0.0, %v346
    %v348 = vpop.f32.mrf.mxu0
    %349 = vdwg.mxu0
    %350 = vst.msk [vmem:[#allocation2] sm:$0xff] %vm188, %v347
    %351 = vrot.lane.b32.xlu0 %v177, 120
    %v352 = vpop.permute.xlu0 %351
    %353 = vrot.lane.b32.xlu0 %v177, 88
    %v354 = vpop.permute.xlu0 %353
    %v355 = vsel %vm188, %v352, 0
    %v357 = vsel %vm188, %v354, 0
    %359 = vmatprep.subr.mxu0 0.0
    %360 = vmatpush1.xpose.msra.mxu0 0.0
    %361 = vmatprep.subr.mxu0 0.0
    %362 = vmatpush1.xpose.msra.mxu0 0.0
    %363 = vmatprep.subr.mxu0 0.0
    %364 = vmatpush1.xpose.msra.mxu0 0.0
    %365 = vmatprep.subr.mxu0 0.0
    %366 = vmatpush1.xpose.msra.mxu0 0.0
    %367 = vmatprep.subr.mxu0 0.0
    %368 = vmatpush1.xpose.msra.mxu0 0.0
    %369 = vmatprep.subr.mxu0 0.0
    %370 = vmatpush1.xpose.msra.mxu0 0.0
    %371 = vmatprep.subr.mxu0 0.0
    %372 = vmatpush1.xpose.msra.mxu0 0.0
    %373 = vmatprep.subr.mxu0 0.0
    %374 = vmatpush1.xpose.msra.mxu0 0.0
    %375 = vmatprep.subr.mxu0 0.0
    %376 = vmatpush1.xpose.msra.mxu0 0.0
    %377 = vmatprep.subr.mxu0 0.0
    %378 = vmatpush1.xpose.msra.mxu0 0.0
    %379 = vmatprep.subr.mxu0 0.0
    %380 = vmatpush1.xpose.msra.mxu0 0.0
    %381 = vmatprep.subr.mxu0 0.0
    %382 = vmatpush1.xpose.msra.mxu0 0.0
    %383 = vmatprep.subr.mxu0 0.0
    %384 = vmatpush1.xpose.msra.mxu0 0.0
    %385 = vmatprep.subr.mxu0 0.0
    %386 = vmatpush1.xpose.msra.mxu0 0.0
    %387 = vmatprep.subr.mxu0 0.0
    %388 = vmatpush1.xpose.msra.mxu0 0.0
    %389 = vmatprep.subr.mxu0 0.0
    %390 = vmatpush1.xpose.msra.mxu0 %v357
    %391 = vmatprep.subr.mxu0 0.0
    %392 = vmatpush2.xpose.msra.mxu0 0.0
    %393 = vmatprep.subr.mxu0 0.0
    %394 = vmatpush2.xpose.msra.mxu0 0.0
    %395 = vmatprep.subr.mxu0 0.0
    %396 = vmatpush2.xpose.msra.mxu0 0.0
    %397 = vmatprep.subr.mxu0 0.0
    %398 = vmatpush2.xpose.msra.mxu0 0.0
    %399 = vmatprep.subr.mxu0 0.0
    %400 = vmatpush2.xpose.msra.mxu0 0.0
    %401 = vmatprep.subr.mxu0 0.0
    %402 = vmatpush2.xpose.msra.mxu0 0.0
    %403 = vmatprep.subr.mxu0 0.0
    %404 = vmatpush2.xpose.msra.mxu0 0.0
    %405 = vmatprep.subr.mxu0 0.0
    %406 = vmatpush2.xpose.msra.mxu0 0.0
    %407 = vmatprep.subr.mxu0 0.0
    %408 = vmatpush2.xpose.msra.mxu0 0.0
    %409 = vmatprep.subr.mxu0 0.0
    %410 = vmatpush2.xpose.msra.mxu0 0.0
    %411 = vmatprep.subr.mxu0 0.0
    %412 = vmatpush2.xpose.msra.mxu0 0.0
    %413 = vmatprep.subr.mxu0 0.0
    %414 = vmatpush2.xpose.msra.mxu0 0.0
    %415 = vmatprep.subr.mxu0 0.0
    %416 = vmatpush2.xpose.msra.mxu0 0.0
    %417 = vmatprep.subr.mxu0 0.0
    %418 = vmatpush2.xpose.msra.mxu0 0.0
    %419 = vmatprep.subr.mxu0 0.0
    %420 = vmatpush2.xpose.msra.mxu0 0.0
    %421 = vmatprep.subr.mxu0 0.0
    %422 = vmatpush2.xpose.msra.mxu0 0.0
    %423 = vmatprep.mubr.f32.mxu0 0.0
    %424 = vmatmul.mubr.f32.gmra.mxu0 %v355
    %v425 = vpop.f32.mrf.mxu0
    %v426 = vadd.f32 0.0, %v425
    %v427 = vpop.f32.mrf.mxu0
    %428 = vdwg.mxu0
    %v429 = vsel %vm188, %v426, -inf
    %430 = vmax.xlane.f32.xlu0 %v429
    %v431 = vpop.xlane.xlu0 %430
    %v432 = vsub.f32 %v426, %v431
    %v433 = vmul.f32 %v432, 1.442695
    %v434 = vpow.pop %v433
    %v435 = vsel %vm188, %v434, 0.0
    %436 = vadd.xlane.f32.xlu0 %v435
    %v437 = vpop.xlane.xlu0 %436
    %v438 = vrcp.pop %v437
    %v439 = vmul.f32 %v434, %v438
    %440 = vrot.lane.b32.xlu0 %v177, 56
    %v441 = vpop.permute.xlu0 %440
    %v444 = vsel %vm188, %v439, 0
    %446 = vmatprep.subr.mxu0 0.0
    %447 = vmatpush1.msra.mxu0 0.0
    %448 = vmatprep.subr.mxu0 0.0
    %449 = vmatpush1.msra.mxu0 0.0
    %450 = vmatprep.subr.mxu0 0.0
    %451 = vmatpush1.msra.mxu0 0.0
    %452 = vmatprep.subr.mxu0 0.0
    %453 = vmatpush1.msra.mxu0 0.0
    %454 = vmatprep.subr.mxu0 0.0
    %455 = vmatpush1.msra.mxu0 0.0
    %456 = vmatprep.subr.mxu0 0.0
    %457 = vmatpush1.msra.mxu0 0.0
    %458 = vmatprep.subr.mxu0 0.0
    %459 = vmatpush1.msra.mxu0 0.0
    %460 = vmatprep.subr.mxu0 0.0
    %461 = vmatpush1.msra.mxu0 0.0
    %462 = vmatprep.subr.mxu0 0.0
    %463 = vmatpush1.msra.mxu0 0.0
    %464 = vmatprep.subr.mxu0 0.0
    %465 = vmatpush1.msra.mxu0 0.0
    %466 = vmatprep.subr.mxu0 0.0
    %467 = vmatpush1.msra.mxu0 0.0
    %468 = vmatprep.subr.mxu0 0.0
    %469 = vmatpush1.msra.mxu0 0.0
    %470 = vmatprep.subr.mxu0 0.0
    %471 = vmatpush1.msra.mxu0 0.0
    %472 = vmatprep.subr.mxu0 0.0
    %473 = vmatpush1.msra.mxu0 0.0
    %474 = vmatprep.subr.mxu0 0.0
    %475 = vmatpush1.msra.mxu0 0.0
    %476 = vmatprep.subr.mxu0 0.0
    %477 = vmatpush1.msra.mxu0 %v441
    %478 = vmatprep.subr.mxu0 0.0
    %479 = vmatpush2.msra.mxu0 0.0
    %480 = vmatprep.subr.mxu0 0.0
    %481 = vmatpush2.msra.mxu0 0.0
    %482 = vmatprep.subr.mxu0 0.0
    %483 = vmatpush2.msra.mxu0 0.0
    %484 = vmatprep.subr.mxu0 0.0
    %485 = vmatpush2.msra.mxu0 0.0
    %486 = vmatprep.subr.mxu0 0.0
    %487 = vmatpush2.msra.mxu0 0.0
    %488 = vmatprep.subr.mxu0 0.0
    %489 = vmatpush2.msra.mxu0 0.0
    %490 = vmatprep.subr.mxu0 0.0
    %491 = vmatpush2.msra.mxu0 0.0
    %492 = vmatprep.subr.mxu0 0.0
    %493 = vmatpush2.msra.mxu0 0.0
    %494 = vmatprep.subr.mxu0 0.0
    %495 = vmatpush2.msra.mxu0 0.0
    %496 = vmatprep.subr.mxu0 0.0
    %497 = vmatpush2.msra.mxu0 0.0
    %498 = vmatprep.subr.mxu0 0.0
    %499 = vmatpush2.msra.mxu0 0.0
    %500 = vmatprep.subr.mxu0 0.0
    %501 = vmatpush2.msra.mxu0 0.0
    %502 = vmatprep.subr.mxu0 0.0
    %503 = vmatpush2.msra.mxu0 0.0
    %504 = vmatprep.subr.mxu0 0.0
    %505 = vmatpush2.msra.mxu0 0.0
    %506 = vmatprep.subr.mxu0 0.0
    %507 = vmatpush2.msra.mxu0 0.0
    %508 = vmatprep.subr.mxu0 0.0
    %509 = vmatpush2.msra.mxu0 0.0
    %510 = vmatprep.mubr.f32.mxu0 0.0
    %511 = vmatmul.mubr.f32.gmra.mxu0 %v444
    %v512 = vpop.f32.mrf.mxu0
    %v513 = vadd.f32 0.0, %v512
    %v514 = vpop.f32.mrf.mxu0
    %515 = vdwg.mxu0
    %517 = vrot.lane.b32.xlu0 %v513, 8
    %v518 = vpop.permute.xlu0 %517
    %vm520 = vcmask 130112
    %521 = vst.msk [vmem:[#allocation2] sm:$0xff] %vm520, %v518
    %522 = vrot.lane.b32.xlu0 %v177, 112
    %v523 = vpop.permute.xlu0 %522
    %524 = vrot.lane.b32.xlu0 %v177, 80
    %v525 = vpop.permute.xlu0 %524
    %v526 = vsel %vm188, %v523, 0
    %v528 = vsel %vm188, %v525, 0
    %530 = vmatprep.subr.mxu0 0.0
    %531 = vmatpush1.xpose.msra.mxu0 0.0
    %532 = vmatprep.subr.mxu0 0.0
    %533 = vmatpush1.xpose.msra.mxu0 0.0
    %534 = vmatprep.subr.mxu0 0.0
    %535 = vmatpush1.xpose.msra.mxu0 0.0
    %536 = vmatprep.subr.mxu0 0.0
    %537 = vmatpush1.xpose.msra.mxu0 0.0
    %538 = vmatprep.subr.mxu0 0.0
    %539 = vmatpush1.xpose.msra.mxu0 0.0
    %540 = vmatprep.subr.mxu0 0.0
    %541 = vmatpush1.xpose.msra.mxu0 0.0
    %542 = vmatprep.subr.mxu0 0.0
    %543 = vmatpush1.xpose.msra.mxu0 0.0
    %544 = vmatprep.subr.mxu0 0.0
    %545 = vmatpush1.xpose.msra.mxu0 0.0
    %546 = vmatprep.subr.mxu0 0.0
    %547 = vmatpush1.xpose.msra.mxu0 0.0
    %548 = vmatprep.subr.mxu0 0.0
    %549 = vmatpush1.xpose.msra.mxu0 0.0
    %550 = vmatprep.subr.mxu0 0.0
    %551 = vmatpush1.xpose.msra.mxu0 0.0
    %552 = vmatprep.subr.mxu0 0.0
    %553 = vmatpush1.xpose.msra.mxu0 0.0
    %554 = vmatprep.subr.mxu0 0.0
    %555 = vmatpush1.xpose.msra.mxu0 0.0
    %556 = vmatprep.subr.mxu0 0.0
    %557 = vmatpush1.xpose.msra.mxu0 0.0
    %558 = vmatprep.subr.mxu0 0.0
    %559 = vmatpush1.xpose.msra.mxu0 0.0
    %560 = vmatprep.subr.mxu0 0.0
    %561 = vmatpush1.xpose.msra.mxu0 %v528
    %562 = vmatprep.subr.mxu0 0.0
    %563 = vmatpush2.xpose.msra.mxu0 0.0
    %564 = vmatprep.subr.mxu0 0.0
    %565 = vmatpush2.xpose.msra.mxu0 0.0
    %566 = vmatprep.subr.mxu0 0.0
    %567 = vmatpush2.xpose.msra.mxu0 0.0
    %568 = vmatprep.subr.mxu0 0.0
    %569 = vmatpush2.xpose.msra.mxu0 0.0
    %570 = vmatprep.subr.mxu0 0.0
    %571 = vmatpush2.xpose.msra.mxu0 0.0
    %572 = vmatprep.subr.mxu0 0.0
    %573 = vmatpush2.xpose.msra.mxu0 0.0
    %574 = vmatprep.subr.mxu0 0.0
    %575 = vmatpush2.xpose.msra.mxu0 0.0
    %576 = vmatprep.subr.mxu0 0.0
    %577 = vmatpush2.xpose.msra.mxu0 0.0
    %578 = vmatprep.subr.mxu0 0.0
    %579 = vmatpush2.xpose.msra.mxu0 0.0
    %580 = vmatprep.subr.mxu0 0.0
    %581 = vmatpush2.xpose.msra.mxu0 0.0
    %582 = vmatprep.subr.mxu0 0.0
    %583 = vmatpush2.xpose.msra.mxu0 0.0
    %584 = vmatprep.subr.mxu0 0.0
    %585 = vmatpush2.xpose.msra.mxu0 0.0
    %586 = vmatprep.subr.mxu0 0.0
    %587 = vmatpush2.xpose.msra.mxu0 0.0
    %588 = vmatprep.subr.mxu0 0.0
    %589 = vmatpush2.xpose.msra.mxu0 0.0
    %590 = vmatprep.subr.mxu0 0.0
    %591 = vmatpush2.xpose.msra.mxu0 0.0
    %592 = vmatprep.subr.mxu0 0.0
    %593 = vmatpush2.xpose.msra.mxu0 0.0
    %594 = vmatprep.mubr.f32.mxu0 0.0
    %595 = vmatmul.mubr.f32.gmra.mxu0 %v526
    %v596 = vpop.f32.mrf.mxu0
    %v597 = vadd.f32 0.0, %v596
    %v598 = vpop.f32.mrf.mxu0
    %599 = vdwg.mxu0
    %v600 = vsel %vm188, %v597, -inf
    %601 = vmax.xlane.f32.xlu0 %v600
    %v602 = vpop.xlane.xlu0 %601
    %v603 = vsub.f32 %v597, %v602
    %v604 = vmul.f32 %v603, 1.442695
    %v605 = vpow.pop %v604
    %v606 = vsel %vm188, %v605, 0.0
    %607 = vadd.xlane.f32.xlu0 %v606
    %v608 = vpop.xlane.xlu0 %607
    %v609 = vrcp.pop %v608
    %v610 = vmul.f32 %v605, %v609
    %611 = vrot.lane.b32.xlu0 %v177, 48
    %v612 = vpop.permute.xlu0 %611
    %v615 = vsel %vm188, %v610, 0
    %617 = vmatprep.subr.mxu0 0.0
    %618 = vmatpush1.msra.mxu0 0.0
    %619 = vmatprep.subr.mxu0 0.0
    %620 = vmatpush1.msra.mxu0 0.0
    %621 = vmatprep.subr.mxu0 0.0
    %622 = vmatpush1.msra.mxu0 0.0
    %623 = vmatprep.subr.mxu0 0.0
    %624 = vmatpush1.msra.mxu0 0.0
    %625 = vmatprep.subr.mxu0 0.0
    %626 = vmatpush1.msra.mxu0 0.0
    %627 = vmatprep.subr.mxu0 0.0
    %628 = vmatpush1.msra.mxu0 0.0
    %629 = vmatprep.subr.mxu0 0.0
    %630 = vmatpush1.msra.mxu0 0.0
    %631 = vmatprep.subr.mxu0 0.0
    %632 = vmatpush1.msra.mxu0 0.0
    %633 = vmatprep.subr.mxu0 0.0
    %634 = vmatpush1.msra.mxu0 0.0
    %635 = vmatprep.subr.mxu0 0.0
    %636 = vmatpush1.msra.mxu0 0.0
    %637 = vmatprep.subr.mxu0 0.0
    %638 = vmatpush1.msra.mxu0 0.0
    %639 = vmatprep.subr.mxu0 0.0
    %640 = vmatpush1.msra.mxu0 0.0
    %641 = vmatprep.subr.mxu0 0.0
    %642 = vmatpush1.msra.mxu0 0.0
    %643 = vmatprep.subr.mxu0 0.0
    %644 = vmatpush1.msra.mxu0 0.0
    %645 = vmatprep.subr.mxu0 0.0
    %646 = vmatpush1.msra.mxu0 0.0
    %647 = vmatprep.subr.mxu0 0.0
    %648 = vmatpush1.msra.mxu0 %v612
    %649 = vmatprep.subr.mxu0 0.0
    %650 = vmatpush2.msra.mxu0 0.0
    %651 = vmatprep.subr.mxu0 0.0
    %652 = vmatpush2.msra.mxu0 0.0
    %653 = vmatprep.subr.mxu0 0.0
    %654 = vmatpush2.msra.mxu0 0.0
    %655 = vmatprep.subr.mxu0 0.0
    %656 = vmatpush2.msra.mxu0 0.0
    %657 = vmatprep.subr.mxu0 0.0
    %658 = vmatpush2.msra.mxu0 0.0
    %659 = vmatprep.subr.mxu0 0.0
    %660 = vmatpush2.msra.mxu0 0.0
    %661 = vmatprep.subr.mxu0 0.0
    %662 = vmatpush2.msra.mxu0 0.0
    %663 = vmatprep.subr.mxu0 0.0
    %664 = vmatpush2.msra.mxu0 0.0
    %665 = vmatprep.subr.mxu0 0.0
    %666 = vmatpush2.msra.mxu0 0.0
    %667 = vmatprep.subr.mxu0 0.0
    %668 = vmatpush2.msra.mxu0 0.0
    %669 = vmatprep.subr.mxu0 0.0
    %670 = vmatpush2.msra.mxu0 0.0
    %671 = vmatprep.subr.mxu0 0.0
    %672 = vmatpush2.msra.mxu0 0.0
    %673 = vmatprep.subr.mxu0 0.0
    %674 = vmatpush2.msra.mxu0 0.0
    %675 = vmatprep.subr.mxu0 0.0
    %676 = vmatpush2.msra.mxu0 0.0
    %677 = vmatprep.subr.mxu0 0.0
    %678 = vmatpush2.msra.mxu0 0.0
    %679 = vmatprep.subr.mxu0 0.0
    %680 = vmatpush2.msra.mxu0 0.0
    %681 = vmatprep.mubr.f32.mxu0 0.0
    %682 = vmatmul.mubr.f32.gmra.mxu0 %v615
    %v683 = vpop.f32.mrf.mxu0
    %v684 = vadd.f32 0.0, %v683
    %v685 = vpop.f32.mrf.mxu0
    %686 = vdwg.mxu0
    %688 = vrot.lane.b32.xlu0 %v684, 16
    %v689 = vpop.permute.xlu0 %688
    %vm691 = vcmask 195712
    %692 = vst.msk [vmem:[#allocation2] sm:$0xff] %vm691, %v689
    %693 = vrot.lane.b32.xlu0 %v177, 104
    %v694 = vpop.permute.xlu0 %693
    %695 = vrot.lane.b32.xlu0 %v177, 72
    %v696 = vpop.permute.xlu0 %695
    %v697 = vsel %vm188, %v694, 0
    %v699 = vsel %vm188, %v696, 0
    %701 = vmatprep.subr.mxu0 0.0
    %702 = vmatpush1.xpose.msra.mxu0 0.0
    %703 = vmatprep.subr.mxu0 0.0
    %704 = vmatpush1.xpose.msra.mxu0 0.0
    %705 = vmatprep.subr.mxu0 0.0
    %706 = vmatpush1.xpose.msra.mxu0 0.0
    %707 = vmatprep.subr.mxu0 0.0
    %708 = vmatpush1.xpose.msra.mxu0 0.0
    %709 = vmatprep.subr.mxu0 0.0
    %710 = vmatpush1.xpose.msra.mxu0 0.0
    %711 = vmatprep.subr.mxu0 0.0
    %712 = vmatpush1.xpose.msra.mxu0 0.0
    %713 = vmatprep.subr.mxu0 0.0
    %714 = vmatpush1.xpose.msra.mxu0 0.0
    %715 = vmatprep.subr.mxu0 0.0
    %716 = vmatpush1.xpose.msra.mxu0 0.0
    %717 = vmatprep.subr.mxu0 0.0
    %718 = vmatpush1.xpose.msra.mxu0 0.0
    %719 = vmatprep.subr.mxu0 0.0
    %720 = vmatpush1.xpose.msra.mxu0 0.0
    %721 = vmatprep.subr.mxu0 0.0
    %722 = vmatpush1.xpose.msra.mxu0 0.0
    %723 = vmatprep.subr.mxu0 0.0
    %724 = vmatpush1.xpose.msra.mxu0 0.0
    %725 = vmatprep.subr.mxu0 0.0
    %726 = vmatpush1.xpose.msra.mxu0 0.0
    %727 = vmatprep.subr.mxu0 0.0
    %728 = vmatpush1.xpose.msra.mxu0 0.0
    %729 = vmatprep.subr.mxu0 0.0
    %730 = vmatpush1.xpose.msra.mxu0 0.0
    %731 = vmatprep.subr.mxu0 0.0
    %732 = vmatpush1.xpose.msra.mxu0 %v699
    %733 = vmatprep.subr.mxu0 0.0
    %734 = vmatpush2.xpose.msra.mxu0 0.0
    %735 = vmatprep.subr.mxu0 0.0
    %736 = vmatpush2.xpose.msra.mxu0 0.0
    %737 = vmatprep.subr.mxu0 0.0
    %738 = vmatpush2.xpose.msra.mxu0 0.0
    %739 = vmatprep.subr.mxu0 0.0
    %740 = vmatpush2.xpose.msra.mxu0 0.0
    %741 = vmatprep.subr.mxu0 0.0
    %742 = vmatpush2.xpose.msra.mxu0 0.0
    %743 = vmatprep.subr.mxu0 0.0
    %744 = vmatpush2.xpose.msra.mxu0 0.0
    %745 = vmatprep.subr.mxu0 0.0
    %746 = vmatpush2.xpose.msra.mxu0 0.0
    %747 = vmatprep.subr.mxu0 0.0
    %748 = vmatpush2.xpose.msra.mxu0 0.0
    %749 = vmatprep.subr.mxu0 0.0
    %750 = vmatpush2.xpose.msra.mxu0 0.0
    %751 = vmatprep.subr.mxu0 0.0
    %752 = vmatpush2.xpose.msra.mxu0 0.0
    %753 = vmatprep.subr.mxu0 0.0
    %754 = vmatpush2.xpose.msra.mxu0 0.0
    %755 = vmatprep.subr.mxu0 0.0
    %756 = vmatpush2.xpose.msra.mxu0 0.0
    %757 = vmatprep.subr.mxu0 0.0
    %758 = vmatpush2.xpose.msra.mxu0 0.0
    %759 = vmatprep.subr.mxu0 0.0
    %760 = vmatpush2.xpose.msra.mxu0 0.0
    %761 = vmatprep.subr.mxu0 0.0
    %762 = vmatpush2.xpose.msra.mxu0 0.0
    %763 = vmatprep.subr.mxu0 0.0
    %764 = vmatpush2.xpose.msra.mxu0 0.0
    %765 = vmatprep.mubr.f32.mxu0 0.0
    %766 = vmatmul.mubr.f32.gmra.mxu0 %v697
    %v767 = vpop.f32.mrf.mxu0
    %v768 = vadd.f32 0.0, %v767
    %v769 = vpop.f32.mrf.mxu0
    %770 = vdwg.mxu0
    %v771 = vsel %vm188, %v768, -inf
    %772 = vmax.xlane.f32.xlu0 %v771
    %v773 = vpop.xlane.xlu0 %772
    %v774 = vsub.f32 %v768, %v773
    %v775 = vmul.f32 %v774, 1.442695
    %v776 = vpow.pop %v775
    %v777 = vsel %vm188, %v776, 0.0
    %778 = vadd.xlane.f32.xlu0 %v777
    %v779 = vpop.xlane.xlu0 %778
    %v780 = vrcp.pop %v779
    %v781 = vmul.f32 %v776, %v780
    %782 = vrot.lane.b32.xlu0 %v177, 40
    %v783 = vpop.permute.xlu0 %782
    %v786 = vsel %vm188, %v781, 0
    %788 = vmatprep.subr.mxu0 0.0
    %789 = vmatpush1.msra.mxu0 0.0
    %790 = vmatprep.subr.mxu0 0.0
    %791 = vmatpush1.msra.mxu0 0.0
    %792 = vmatprep.subr.mxu0 0.0
    %793 = vmatpush1.msra.mxu0 0.0
    %794 = vmatprep.subr.mxu0 0.0
    %795 = vmatpush1.msra.mxu0 0.0
    %796 = vmatprep.subr.mxu0 0.0
    %797 = vmatpush1.msra.mxu0 0.0
    %798 = vmatprep.subr.mxu0 0.0
    %799 = vmatpush1.msra.mxu0 0.0
    %800 = vmatprep.subr.mxu0 0.0
    %801 = vmatpush1.msra.mxu0 0.0
    %802 = vmatprep.subr.mxu0 0.0
    %803 = vmatpush1.msra.mxu0 0.0
    %804 = vmatprep.subr.mxu0 0.0
    %805 = vmatpush1.msra.mxu0 0.0
    %806 = vmatprep.subr.mxu0 0.0
    %807 = vmatpush1.msra.mxu0 0.0
    %808 = vmatprep.subr.mxu0 0.0
    %809 = vmatpush1.msra.mxu0 0.0
    %810 = vmatprep.subr.mxu0 0.0
    %811 = vmatpush1.msra.mxu0 0.0
    %812 = vmatprep.subr.mxu0 0.0
    %813 = vmatpush1.msra.mxu0 0.0
    %814 = vmatprep.subr.mxu0 0.0
    %815 = vmatpush1.msra.mxu0 0.0
    %816 = vmatprep.subr.mxu0 0.0
    %817 = vmatpush1.msra.mxu0 0.0
    %818 = vmatprep.subr.mxu0 0.0
    %819 = vmatpush1.msra.mxu0 %v783
    %820 = vmatprep.subr.mxu0 0.0
    %821 = vmatpush2.msra.mxu0 0.0
    %822 = vmatprep.subr.mxu0 0.0
    %823 = vmatpush2.msra.mxu0 0.0
    %824 = vmatprep.subr.mxu0 0.0
    %825 = vmatpush2.msra.mxu0 0.0
    %826 = vmatprep.subr.mxu0 0.0
    %827 = vmatpush2.msra.mxu0 0.0
    %828 = vmatprep.subr.mxu0 0.0
    %829 = vmatpush2.msra.mxu0 0.0
    %830 = vmatprep.subr.mxu0 0.0
    %831 = vmatpush2.msra.mxu0 0.0
    %832 = vmatprep.subr.mxu0 0.0
    %833 = vmatpush2.msra.mxu0 0.0
    %834 = vmatprep.subr.mxu0 0.0
    %835 = vmatpush2.msra.mxu0 0.0
    %836 = vmatprep.subr.mxu0 0.0
    %837 = vmatpush2.msra.mxu0 0.0
    %838 = vmatprep.subr.mxu0 0.0
    %839 = vmatpush2.msra.mxu0 0.0
    %840 = vmatprep.subr.mxu0 0.0
    %841 = vmatpush2.msra.mxu0 0.0
    %842 = vmatprep.subr.mxu0 0.0
    %843 = vmatpush2.msra.mxu0 0.0
    %844 = vmatprep.subr.mxu0 0.0
    %845 = vmatpush2.msra.mxu0 0.0
    %846 = vmatprep.subr.mxu0 0.0
    %847 = vmatpush2.msra.mxu0 0.0
    %848 = vmatprep.subr.mxu0 0.0
    %849 = vmatpush2.msra.mxu0 0.0
    %850 = vmatprep.subr.mxu0 0.0
    %851 = vmatpush2.msra.mxu0 0.0
    %852 = vmatprep.mubr.f32.mxu0 0.0
    %853 = vmatmul.mubr.f32.gmra.mxu0 %v786
    %v854 = vpop.f32.mrf.mxu0
    %v855 = vadd.f32 0.0, %v854
    %v856 = vpop.f32.mrf.mxu0
    %857 = vdwg.mxu0
    %859 = vrot.lane.b32.xlu0 %v855, 24
    %v860 = vpop.permute.xlu0 %859
    %vm862 = vcmask 261312
    %863 = vst.msk [vmem:[#allocation2] sm:$0xff] %vm862, %v860
    %865 = vrot.lane.b32.xlu0 %v182, 96
    %v866 = vpop.permute.xlu0 %865
    %v867 = vsel %vm188, %v182, 0
    %v869 = vsel %vm188, %v866, 0
    %871 = vmatprep.subr.mxu0 0.0
    %872 = vmatpush1.xpose.msra.mxu0 0.0
    %873 = vmatprep.subr.mxu0 0.0
    %874 = vmatpush1.xpose.msra.mxu0 0.0
    %875 = vmatprep.subr.mxu0 0.0
    %876 = vmatpush1.xpose.msra.mxu0 0.0
    %877 = vmatprep.subr.mxu0 0.0
    %878 = vmatpush1.xpose.msra.mxu0 0.0
    %879 = vmatprep.subr.mxu0 0.0
    %880 = vmatpush1.xpose.msra.mxu0 0.0
    %881 = vmatprep.subr.mxu0 0.0
    %882 = vmatpush1.xpose.msra.mxu0 0.0
    %883 = vmatprep.subr.mxu0 0.0
    %884 = vmatpush1.xpose.msra.mxu0 0.0
    %885 = vmatprep.subr.mxu0 0.0
    %886 = vmatpush1.xpose.msra.mxu0 0.0
    %887 = vmatprep.subr.mxu0 0.0
    %888 = vmatpush1.xpose.msra.mxu0 0.0
    %889 = vmatprep.subr.mxu0 0.0
    %890 = vmatpush1.xpose.msra.mxu0 0.0
    %891 = vmatprep.subr.mxu0 0.0
    %892 = vmatpush1.xpose.msra.mxu0 0.0
    %893 = vmatprep.subr.mxu0 0.0
    %894 = vmatpush1.xpose.msra.mxu0 0.0
    %895 = vmatprep.subr.mxu0 0.0
    %896 = vmatpush1.xpose.msra.mxu0 0.0
    %897 = vmatprep.subr.mxu0 0.0
    %898 = vmatpush1.xpose.msra.mxu0 0.0
    %899 = vmatprep.subr.mxu0 0.0
    %900 = vmatpush1.xpose.msra.mxu0 0.0
    %901 = vmatprep.subr.mxu0 0.0
    %902 = vmatpush1.xpose.msra.mxu0 %v869
    %903 = vmatprep.subr.mxu0 0.0
    %904 = vmatpush2.xpose.msra.mxu0 0.0
    %905 = vmatprep.subr.mxu0 0.0
    %906 = vmatpush2.xpose.msra.mxu0 0.0
    %907 = vmatprep.subr.mxu0 0.0
    %908 = vmatpush2.xpose.msra.mxu0 0.0
    %909 = vmatprep.subr.mxu0 0.0
    %910 = vmatpush2.xpose.msra.mxu0 0.0
    %911 = vmatprep.subr.mxu0 0.0
    %912 = vmatpush2.xpose.msra.mxu0 0.0
    %913 = vmatprep.subr.mxu0 0.0
    %914 = vmatpush2.xpose.msra.mxu0 0.0
    %915 = vmatprep.subr.mxu0 0.0
    %916 = vmatpush2.xpose.msra.mxu0 0.0
    %917 = vmatprep.subr.mxu0 0.0
    %918 = vmatpush2.xpose.msra.mxu0 0.0
    %919 = vmatprep.subr.mxu0 0.0
    %920 = vmatpush2.xpose.msra.mxu0 0.0
    %921 = vmatprep.subr.mxu0 0.0
    %922 = vmatpush2.xpose.msra.mxu0 0.0
    %923 = vmatprep.subr.mxu0 0.0
    %924 = vmatpush2.xpose.msra.mxu0 0.0
    %925 = vmatprep.subr.mxu0 0.0
    %926 = vmatpush2.xpose.msra.mxu0 0.0
    %927 = vmatprep.subr.mxu0 0.0
    %928 = vmatpush2.xpose.msra.mxu0 0.0
    %929 = vmatprep.subr.mxu0 0.0
    %930 = vmatpush2.xpose.msra.mxu0 0.0
    %931 = vmatprep.subr.mxu0 0.0
    %932 = vmatpush2.xpose.msra.mxu0 0.0
    %933 = vmatprep.subr.mxu0 0.0
    %934 = vmatpush2.xpose.msra.mxu0 0.0
    %935 = vmatprep.mubr.f32.mxu0 0.0
    %936 = vmatmul.mubr.f32.gmra.mxu0 %v867
    %v937 = vpop.f32.mrf.mxu0
    %v938 = vadd.f32 0.0, %v937
    %v939 = vpop.f32.mrf.mxu0
    %940 = vdwg.mxu0
    %v941 = vsel %vm188, %v938, -inf
    %942 = vmax.xlane.f32.xlu0 %v941
    %v943 = vpop.xlane.xlu0 %942
    %v944 = vsub.f32 %v938, %v943
    %v945 = vmul.f32 %v944, 1.442695
    %v946 = vpow.pop %v945
    %v947 = vsel %vm188, %v946, 0.0
    %948 = vadd.xlane.f32.xlu0 %v947
    %v949 = vpop.xlane.xlu0 %948
    %v950 = vrcp.pop %v949
    %v951 = vmul.f32 %v946, %v950
    %952 = vrot.lane.b32.xlu0 %v182, 64
    %v953 = vpop.permute.xlu0 %952
    %v956 = vsel %vm188, %v951, 0
    %958 = vmatprep.subr.mxu0 0.0
    %959 = vmatpush1.msra.mxu0 0.0
    %960 = vmatprep.subr.mxu0 0.0
    %961 = vmatpush1.msra.mxu0 0.0
    %962 = vmatprep.subr.mxu0 0.0
    %963 = vmatpush1.msra.mxu0 0.0
    %964 = vmatprep.subr.mxu0 0.0
    %965 = vmatpush1.msra.mxu0 0.0
    %966 = vmatprep.subr.mxu0 0.0
    %967 = vmatpush1.msra.mxu0 0.0
    %968 = vmatprep.subr.mxu0 0.0
    %969 = vmatpush1.msra.mxu0 0.0
    %970 = vmatprep.subr.mxu0 0.0
    %971 = vmatpush1.msra.mxu0 0.0
    %972 = vmatprep.subr.mxu0 0.0
    %973 = vmatpush1.msra.mxu0 0.0
    %974 = vmatprep.subr.mxu0 0.0
    %975 = vmatpush1.msra.mxu0 0.0
    %976 = vmatprep.subr.mxu0 0.0
    %977 = vmatpush1.msra.mxu0 0.0
    %978 = vmatprep.subr.mxu0 0.0
    %979 = vmatpush1.msra.mxu0 0.0
    %980 = vmatprep.subr.mxu0 0.0
    %981 = vmatpush1.msra.mxu0 0.0
    %982 = vmatprep.subr.mxu0 0.0
    %983 = vmatpush1.msra.mxu0 0.0
    %984 = vmatprep.subr.mxu0 0.0
    %985 = vmatpush1.msra.mxu0 0.0
    %986 = vmatprep.subr.mxu0 0.0
    %987 = vmatpush1.msra.mxu0 0.0
    %988 = vmatprep.subr.mxu0 0.0
    %989 = vmatpush1.msra.mxu0 %v953
    %990 = vmatprep.subr.mxu0 0.0
    %991 = vmatpush2.msra.mxu0 0.0
    %992 = vmatprep.subr.mxu0 0.0
    %993 = vmatpush2.msra.mxu0 0.0
    %994 = vmatprep.subr.mxu0 0.0
    %995 = vmatpush2.msra.mxu0 0.0
    %996 = vmatprep.subr.mxu0 0.0
    %997 = vmatpush2.msra.mxu0 0.0
    %998 = vmatprep.subr.mxu0 0.0
    %999 = vmatpush2.msra.mxu0 0.0
    %1000 = vmatprep.subr.mxu0 0.0
    %1001 = vmatpush2.msra.mxu0 0.0
    %1002 = vmatprep.subr.mxu0 0.0
    %1003 = vmatpush2.msra.mxu0 0.0
    %1004 = vmatprep.subr.mxu0 0.0
    %1005 = vmatpush2.msra.mxu0 0.0
    %1006 = vmatprep.subr.mxu0 0.0
    %1007 = vmatpush2.msra.mxu0 0.0
    %1008 = vmatprep.subr.mxu0 0.0
    %1009 = vmatpush2.msra.mxu0 0.0
    %1010 = vmatprep.subr.mxu0 0.0
    %1011 = vmatpush2.msra.mxu0 0.0
    %1012 = vmatprep.subr.mxu0 0.0
    %1013 = vmatpush2.msra.mxu0 0.0
    %1014 = vmatprep.subr.mxu0 0.0
    %1015 = vmatpush2.msra.mxu0 0.0
    %1016 = vmatprep.subr.mxu0 0.0
    %1017 = vmatpush2.msra.mxu0 0.0
    %1018 = vmatprep.subr.mxu0 0.0
    %1019 = vmatpush2.msra.mxu0 0.0
    %1020 = vmatprep.subr.mxu0 0.0
    %1021 = vmatpush2.msra.mxu0 0.0
    %1022 = vmatprep.mubr.f32.mxu0 0.0
    %1023 = vmatmul.mubr.f32.gmra.mxu0 %v956
    %v1024 = vpop.f32.mrf.mxu0
    %v1025 = vadd.f32 0.0, %v1024
    %v1026 = vpop.f32.mrf.mxu0
    %1027 = vdwg.mxu0
    %1028 = vst.msk [vmem:[#allocation2 + $0x8] sm:$0xff] %vm188, %v1025
    %1029 = vrot.lane.b32.xlu0 %v182, 120
    %v1030 = vpop.permute.xlu0 %1029
    %1031 = vrot.lane.b32.xlu0 %v182, 88
    %v1032 = vpop.permute.xlu0 %1031
    %v1033 = vsel %vm188, %v1030, 0
    %v1035 = vsel %vm188, %v1032, 0
    %1037 = vmatprep.subr.mxu0 0.0
    %1038 = vmatpush1.xpose.msra.mxu0 0.0
    %1039 = vmatprep.subr.mxu0 0.0
    %1040 = vmatpush1.xpose.msra.mxu0 0.0
    %1041 = vmatprep.subr.mxu0 0.0
    %1042 = vmatpush1.xpose.msra.mxu0 0.0
    %1043 = vmatprep.subr.mxu0 0.0
    %1044 = vmatpush1.xpose.msra.mxu0 0.0
    %1045 = vmatprep.subr.mxu0 0.0
    %1046 = vmatpush1.xpose.msra.mxu0 0.0
    %1047 = vmatprep.subr.mxu0 0.0
    %1048 = vmatpush1.xpose.msra.mxu0 0.0
    %1049 = vmatprep.subr.mxu0 0.0
    %1050 = vmatpush1.xpose.msra.mxu0 0.0
    %1051 = vmatprep.subr.mxu0 0.0
    %1052 = vmatpush1.xpose.msra.mxu0 0.0
    %1053 = vmatprep.subr.mxu0 0.0
    %1054 = vmatpush1.xpose.msra.mxu0 0.0
    %1055 = vmatprep.subr.mxu0 0.0
    %1056 = vmatpush1.xpose.msra.mxu0 0.0
    %1057 = vmatprep.subr.mxu0 0.0
    %1058 = vmatpush1.xpose.msra.mxu0 0.0
    %1059 = vmatprep.subr.mxu0 0.0
    %1060 = vmatpush1.xpose.msra.mxu0 0.0
    %1061 = vmatprep.subr.mxu0 0.0
    %1062 = vmatpush1.xpose.msra.mxu0 0.0
    %1063 = vmatprep.subr.mxu0 0.0
    %1064 = vmatpush1.xpose.msra.mxu0 0.0
    %1065 = vmatprep.subr.mxu0 0.0
    %1066 = vmatpush1.xpose.msra.mxu0 0.0
    %1067 = vmatprep.subr.mxu0 0.0
    %1068 = vmatpush1.xpose.msra.mxu0 %v1035
    %1069 = vmatprep.subr.mxu0 0.0
    %1070 = vmatpush2.xpose.msra.mxu0 0.0
    %1071 = vmatprep.subr.mxu0 0.0
    %1072 = vmatpush2.xpose.msra.mxu0 0.0
    %1073 = vmatprep.subr.mxu0 0.0
    %1074 = vmatpush2.xpose.msra.mxu0 0.0
    %1075 = vmatprep.subr.mxu0 0.0
    %1076 = vmatpush2.xpose.msra.mxu0 0.0
    %1077 = vmatprep.subr.mxu0 0.0
    %1078 = vmatpush2.xpose.msra.mxu0 0.0
    %1079 = vmatprep.subr.mxu0 0.0
    %1080 = vmatpush2.xpose.msra.mxu0 0.0
    %1081 = vmatprep.subr.mxu0 0.0
    %1082 = vmatpush2.xpose.msra.mxu0 0.0
    %1083 = vmatprep.subr.mxu0 0.0
    %1084 = vmatpush2.xpose.msra.mxu0 0.0
    %1085 = vmatprep.subr.mxu0 0.0
    %1086 = vmatpush2.xpose.msra.mxu0 0.0
    %1087 = vmatprep.subr.mxu0 0.0
    %1088 = vmatpush2.xpose.msra.mxu0 0.0
    %1089 = vmatprep.subr.mxu0 0.0
    %1090 = vmatpush2.xpose.msra.mxu0 0.0
    %1091 = vmatprep.subr.mxu0 0.0
    %1092 = vmatpush2.xpose.msra.mxu0 0.0
    %1093 = vmatprep.subr.mxu0 0.0
    %1094 = vmatpush2.xpose.msra.mxu0 0.0
    %1095 = vmatprep.subr.mxu0 0.0
    %1096 = vmatpush2.xpose.msra.mxu0 0.0
    %1097 = vmatprep.subr.mxu0 0.0
    %1098 = vmatpush2.xpose.msra.mxu0 0.0
    %1099 = vmatprep.subr.mxu0 0.0
    %1100 = vmatpush2.xpose.msra.mxu0 0.0
    %1101 = vmatprep.mubr.f32.mxu0 0.0
    %1102 = vmatmul.mubr.f32.gmra.mxu0 %v1033
    %v1103 = vpop.f32.mrf.mxu0
    %v1104 = vadd.f32 0.0, %v1103
    %v1105 = vpop.f32.mrf.mxu0
    %1106 = vdwg.mxu0
    %v1107 = vsel %vm188, %v1104, -inf
    %1108 = vmax.xlane.f32.xlu0 %v1107
    %v1109 = vpop.xlane.xlu0 %1108
    %v1110 = vsub.f32 %v1104, %v1109
    %v1111 = vmul.f32 %v1110, 1.442695
    %v1112 = vpow.pop %v1111
    %v1113 = vsel %vm188, %v1112, 0.0
    %1114 = vadd.xlane.f32.xlu0 %v1113
    %v1115 = vpop.xlane.xlu0 %1114
    %v1116 = vrcp.pop %v1115
    %v1117 = vmul.f32 %v1112, %v1116
    %1118 = vrot.lane.b32.xlu0 %v182, 56
    %v1119 = vpop.permute.xlu0 %1118
    %v1122 = vsel %vm188, %v1117, 0
    %1124 = vmatprep.subr.mxu0 0.0
    %1125 = vmatpush1.msra.mxu0 0.0
    %1126 = vmatprep.subr.mxu0 0.0
    %1127 = vmatpush1.msra.mxu0 0.0
    %1128 = vmatprep.subr.mxu0 0.0
    %1129 = vmatpush1.msra.mxu0 0.0
    %1130 = vmatprep.subr.mxu0 0.0
    %1131 = vmatpush1.msra.mxu0 0.0
    %1132 = vmatprep.subr.mxu0 0.0
    %1133 = vmatpush1.msra.mxu0 0.0
    %1134 = vmatprep.subr.mxu0 0.0
    %1135 = vmatpush1.msra.mxu0 0.0
    %1136 = vmatprep.subr.mxu0 0.0
    %1137 = vmatpush1.msra.mxu0 0.0
    %1138 = vmatprep.subr.mxu0 0.0
    %1139 = vmatpush1.msra.mxu0 0.0
    %1140 = vmatprep.subr.mxu0 0.0
    %1141 = vmatpush1.msra.mxu0 0.0
    %1142 = vmatprep.subr.mxu0 0.0
    %1143 = vmatpush1.msra.mxu0 0.0
    %1144 = vmatprep.subr.mxu0 0.0
    %1145 = vmatpush1.msra.mxu0 0.0
    %1146 = vmatprep.subr.mxu0 0.0
    %1147 = vmatpush1.msra.mxu0 0.0
    %1148 = vmatprep.subr.mxu0 0.0
    %1149 = vmatpush1.msra.mxu0 0.0
    %1150 = vmatprep.subr.mxu0 0.0
    %1151 = vmatpush1.msra.mxu0 0.0
    %1152 = vmatprep.subr.mxu0 0.0
    %1153 = vmatpush1.msra.mxu0 0.0
    %1154 = vmatprep.subr.mxu0 0.0
    %1155 = vmatpush1.msra.mxu0 %v1119
    %1156 = vmatprep.subr.mxu0 0.0
    %1157 = vmatpush2.msra.mxu0 0.0
    %1158 = vmatprep.subr.mxu0 0.0
    %1159 = vmatpush2.msra.mxu0 0.0
    %1160 = vmatprep.subr.mxu0 0.0
    %1161 = vmatpush2.msra.mxu0 0.0
    %1162 = vmatprep.subr.mxu0 0.0
    %1163 = vmatpush2.msra.mxu0 0.0
    %1164 = vmatprep.subr.mxu0 0.0
    %1165 = vmatpush2.msra.mxu0 0.0
    %1166 = vmatprep.subr.mxu0 0.0
    %1167 = vmatpush2.msra.mxu0 0.0
    %1168 = vmatprep.subr.mxu0 0.0
    %1169 = vmatpush2.msra.mxu0 0.0
    %1170 = vmatprep.subr.mxu0 0.0
    %1171 = vmatpush2.msra.mxu0 0.0
    %1172 = vmatprep.subr.mxu0 0.0
    %1173 = vmatpush2.msra.mxu0 0.0
    %1174 = vmatprep.subr.mxu0 0.0
    %1175 = vmatpush2.msra.mxu0 0.0
    %1176 = vmatprep.subr.mxu0 0.0
    %1177 = vmatpush2.msra.mxu0 0.0
    %1178 = vmatprep.subr.mxu0 0.0
    %1179 = vmatpush2.msra.mxu0 0.0
    %1180 = vmatprep.subr.mxu0 0.0
    %1181 = vmatpush2.msra.mxu0 0.0
    %1182 = vmatprep.subr.mxu0 0.0
    %1183 = vmatpush2.msra.mxu0 0.0
    %1184 = vmatprep.subr.mxu0 0.0
    %1185 = vmatpush2.msra.mxu0 0.0
    %1186 = vmatprep.subr.mxu0 0.0
    %1187 = vmatpush2.msra.mxu0 0.0
    %1188 = vmatprep.mubr.f32.mxu0 0.0
    %1189 = vmatmul.mubr.f32.gmra.mxu0 %v1122
    %v1190 = vpop.f32.mrf.mxu0
    %v1191 = vadd.f32 0.0, %v1190
    %v1192 = vpop.f32.mrf.mxu0
    %1193 = vdwg.mxu0
    %1195 = vrot.lane.b32.xlu0 %v1191, 8
    %v1196 = vpop.permute.xlu0 %1195
    %1198 = vst.msk [vmem:[#allocation2 + $0x8] sm:$0xff] %vm520, %v1196
    %1199 = vrot.lane.b32.xlu0 %v182, 112
    %v1200 = vpop.permute.xlu0 %1199
    %1201 = vrot.lane.b32.xlu0 %v182, 80
    %v1202 = vpop.permute.xlu0 %1201
    %v1203 = vsel %vm188, %v1200, 0
    %v1205 = vsel %vm188, %v1202, 0
    %1207 = vmatprep.subr.mxu0 0.0
    %1208 = vmatpush1.xpose.msra.mxu0 0.0
    %1209 = vmatprep.subr.mxu0 0.0
    %1210 = vmatpush1.xpose.msra.mxu0 0.0
    %1211 = vmatprep.subr.mxu0 0.0
    %1212 = vmatpush1.xpose.msra.mxu0 0.0
    %1213 = vmatprep.subr.mxu0 0.0
    %1214 = vmatpush1.xpose.msra.mxu0 0.0
    %1215 = vmatprep.subr.mxu0 0.0
    %1216 = vmatpush1.xpose.msra.mxu0 0.0
    %1217 = vmatprep.subr.mxu0 0.0
    %1218 = vmatpush1.xpose.msra.mxu0 0.0
    %1219 = vmatprep.subr.mxu0 0.0
    %1220 = vmatpush1.xpose.msra.mxu0 0.0
    %1221 = vmatprep.subr.mxu0 0.0
    %1222 = vmatpush1.xpose.msra.mxu0 0.0
    %1223 = vmatprep.subr.mxu0 0.0
    %1224 = vmatpush1.xpose.msra.mxu0 0.0
    %1225 = vmatprep.subr.mxu0 0.0
    %1226 = vmatpush1.xpose.msra.mxu0 0.0
    %1227 = vmatprep.subr.mxu0 0.0
    %1228 = vmatpush1.xpose.msra.mxu0 0.0
    %1229 = vmatprep.subr.mxu0 0.0
    %1230 = vmatpush1.xpose.msra.mxu0 0.0
    %1231 = vmatprep.subr.mxu0 0.0
    %1232 = vmatpush1.xpose.msra.mxu0 0.0
    %1233 = vmatprep.subr.mxu0 0.0
    %1234 = vmatpush1.xpose.msra.mxu0 0.0
    %1235 = vmatprep.subr.mxu0 0.0
    %1236 = vmatpush1.xpose.msra.mxu0 0.0
    %1237 = vmatprep.subr.mxu0 0.0
    %1238 = vmatpush1.xpose.msra.mxu0 %v1205
    %1239 = vmatprep.subr.mxu0 0.0
    %1240 = vmatpush2.xpose.msra.mxu0 0.0
    %1241 = vmatprep.subr.mxu0 0.0
    %1242 = vmatpush2.xpose.msra.mxu0 0.0
    %1243 = vmatprep.subr.mxu0 0.0
    %1244 = vmatpush2.xpose.msra.mxu0 0.0
    %1245 = vmatprep.subr.mxu0 0.0
    %1246 = vmatpush2.xpose.msra.mxu0 0.0
    %1247 = vmatprep.subr.mxu0 0.0
    %1248 = vmatpush2.xpose.msra.mxu0 0.0
    %1249 = vmatprep.subr.mxu0 0.0
    %1250 = vmatpush2.xpose.msra.mxu0 0.0
    %1251 = vmatprep.subr.mxu0 0.0
    %1252 = vmatpush2.xpose.msra.mxu0 0.0
    %1253 = vmatprep.subr.mxu0 0.0
    %1254 = vmatpush2.xpose.msra.mxu0 0.0
    %1255 = vmatprep.subr.mxu0 0.0
    %1256 = vmatpush2.xpose.msra.mxu0 0.0
    %1257 = vmatprep.subr.mxu0 0.0
    %1258 = vmatpush2.xpose.msra.mxu0 0.0
    %1259 = vmatprep.subr.mxu0 0.0
    %1260 = vmatpush2.xpose.msra.mxu0 0.0
    %1261 = vmatprep.subr.mxu0 0.0
    %1262 = vmatpush2.xpose.msra.mxu0 0.0
    %1263 = vmatprep.subr.mxu0 0.0
    %1264 = vmatpush2.xpose.msra.mxu0 0.0
    %1265 = vmatprep.subr.mxu0 0.0
    %1266 = vmatpush2.xpose.msra.mxu0 0.0
    %1267 = vmatprep.subr.mxu0 0.0
    %1268 = vmatpush2.xpose.msra.mxu0 0.0
    %1269 = vmatprep.subr.mxu0 0.0
    %1270 = vmatpush2.xpose.msra.mxu0 0.0
    %1271 = vmatprep.mubr.f32.mxu0 0.0
    %1272 = vmatmul.mubr.f32.gmra.mxu0 %v1203
    %v1273 = vpop.f32.mrf.mxu0
    %v1274 = vadd.f32 0.0, %v1273
    %v1275 = vpop.f32.mrf.mxu0
    %1276 = vdwg.mxu0
    %v1277 = vsel %vm188, %v1274, -inf
    %1278 = vmax.xlane.f32.xlu0 %v1277
    %v1279 = vpop.xlane.xlu0 %1278
    %v1280 = vsub.f32 %v1274, %v1279
    %v1281 = vmul.f32 %v1280, 1.442695
    %v1282 = vpow.pop %v1281
    %v1283 = vsel %vm188, %v1282, 0.0
    %1284 = vadd.xlane.f32.xlu0 %v1283
    %v1285 = vpop.xlane.xlu0 %1284
    %v1286 = vrcp.pop %v1285
    %v1287 = vmul.f32 %v1282, %v1286
    %1288 = vrot.lane.b32.xlu0 %v182, 48
    %v1289 = vpop.permute.xlu0 %1288
    %v1292 = vsel %vm188, %v1287, 0
    %1294 = vmatprep.subr.mxu0 0.0
    %1295 = vmatpush1.msra.mxu0 0.0
    %1296 = vmatprep.subr.mxu0 0.0
    %1297 = vmatpush1.msra.mxu0 0.0
    %1298 = vmatprep.subr.mxu0 0.0
    %1299 = vmatpush1.msra.mxu0 0.0
    %1300 = vmatprep.subr.mxu0 0.0
    %1301 = vmatpush1.msra.mxu0 0.0
    %1302 = vmatprep.subr.mxu0 0.0
    %1303 = vmatpush1.msra.mxu0 0.0
    %1304 = vmatprep.subr.mxu0 0.0
    %1305 = vmatpush1.msra.mxu0 0.0
    %1306 = vmatprep.subr.mxu0 0.0
    %1307 = vmatpush1.msra.mxu0 0.0
    %1308 = vmatprep.subr.mxu0 0.0
    %1309 = vmatpush1.msra.mxu0 0.0
    %1310 = vmatprep.subr.mxu0 0.0
    %1311 = vmatpush1.msra.mxu0 0.0
    %1312 = vmatprep.subr.mxu0 0.0
    %1313 = vmatpush1.msra.mxu0 0.0
    %1314 = vmatprep.subr.mxu0 0.0
    %1315 = vmatpush1.msra.mxu0 0.0
    %1316 = vmatprep.subr.mxu0 0.0
    %1317 = vmatpush1.msra.mxu0 0.0
    %1318 = vmatprep.subr.mxu0 0.0
    %1319 = vmatpush1.msra.mxu0 0.0
    %1320 = vmatprep.subr.mxu0 0.0
    %1321 = vmatpush1.msra.mxu0 0.0
    %1322 = vmatprep.subr.mxu0 0.0
    %1323 = vmatpush1.msra.mxu0 0.0
    %1324 = vmatprep.subr.mxu0 0.0
    %1325 = vmatpush1.msra.mxu0 %v1289
    %1326 = vmatprep.subr.mxu0 0.0
    %1327 = vmatpush2.msra.mxu0 0.0
    %1328 = vmatprep.subr.mxu0 0.0
    %1329 = vmatpush2.msra.mxu0 0.0
    %1330 = vmatprep.subr.mxu0 0.0
    %1331 = vmatpush2.msra.mxu0 0.0
    %1332 = vmatprep.subr.mxu0 0.0
    %1333 = vmatpush2.msra.mxu0 0.0
    %1334 = vmatprep.subr.mxu0 0.0
    %1335 = vmatpush2.msra.mxu0 0.0
    %1336 = vmatprep.subr.mxu0 0.0
    %1337 = vmatpush2.msra.mxu0 0.0
    %1338 = vmatprep.subr.mxu0 0.0
    %1339 = vmatpush2.msra.mxu0 0.0
    %1340 = vmatprep.subr.mxu0 0.0
    %1341 = vmatpush2.msra.mxu0 0.0
    %1342 = vmatprep.subr.mxu0 0.0
    %1343 = vmatpush2.msra.mxu0 0.0
    %1344 = vmatprep.subr.mxu0 0.0
    %1345 = vmatpush2.msra.mxu0 0.0
    %1346 = vmatprep.subr.mxu0 0.0
    %1347 = vmatpush2.msra.mxu0 0.0
    %1348 = vmatprep.subr.mxu0 0.0
    %1349 = vmatpush2.msra.mxu0 0.0
    %1350 = vmatprep.subr.mxu0 0.0
    %1351 = vmatpush2.msra.mxu0 0.0
    %1352 = vmatprep.subr.mxu0 0.0
    %1353 = vmatpush2.msra.mxu0 0.0
    %1354 = vmatprep.subr.mxu0 0.0
    %1355 = vmatpush2.msra.mxu0 0.0
    %1356 = vmatprep.subr.mxu0 0.0
    %1357 = vmatpush2.msra.mxu0 0.0
    %1358 = vmatprep.mubr.f32.mxu0 0.0
    %1359 = vmatmul.mubr.f32.gmra.mxu0 %v1292
    %v1360 = vpop.f32.mrf.mxu0
    %v1361 = vadd.f32 0.0, %v1360
    %v1362 = vpop.f32.mrf.mxu0
    %1363 = vdwg.mxu0
    %1365 = vrot.lane.b32.xlu0 %v1361, 16
    %v1366 = vpop.permute.xlu0 %1365
    %1368 = vst.msk [vmem:[#allocation2 + $0x8] sm:$0xff] %vm691, %v1366
    %1369 = vrot.lane.b32.xlu0 %v182, 104
    %v1370 = vpop.permute.xlu0 %1369
    %1371 = vrot.lane.b32.xlu0 %v182, 72
    %v1372 = vpop.permute.xlu0 %1371
    %v1373 = vsel %vm188, %v1370, 0
    %v1375 = vsel %vm188, %v1372, 0
    %1377 = vmatprep.subr.mxu0 0.0
    %1378 = vmatpush1.xpose.msra.mxu0 0.0
    %1379 = vmatprep.subr.mxu0 0.0
    %1380 = vmatpush1.xpose.msra.mxu0 0.0
    %1381 = vmatprep.subr.mxu0 0.0
    %1382 = vmatpush1.xpose.msra.mxu0 0.0
    %1383 = vmatprep.subr.mxu0 0.0
    %1384 = vmatpush1.xpose.msra.mxu0 0.0
    %1385 = vmatprep.subr.mxu0 0.0
    %1386 = vmatpush1.xpose.msra.mxu0 0.0
    %1387 = vmatprep.subr.mxu0 0.0
    %1388 = vmatpush1.xpose.msra.mxu0 0.0
    %1389 = vmatprep.subr.mxu0 0.0
    %1390 = vmatpush1.xpose.msra.mxu0 0.0
    %1391 = vmatprep.subr.mxu0 0.0
    %1392 = vmatpush1.xpose.msra.mxu0 0.0
    %1393 = vmatprep.subr.mxu0 0.0
    %1394 = vmatpush1.xpose.msra.mxu0 0.0
    %1395 = vmatprep.subr.mxu0 0.0
    %1396 = vmatpush1.xpose.msra.mxu0 0.0
    %1397 = vmatprep.subr.mxu0 0.0
    %1398 = vmatpush1.xpose.msra.mxu0 0.0
    %1399 = vmatprep.subr.mxu0 0.0
    %1400 = vmatpush1.xpose.msra.mxu0 0.0
    %1401 = vmatprep.subr.mxu0 0.0
    %1402 = vmatpush1.xpose.msra.mxu0 0.0
    %1403 = vmatprep.subr.mxu0 0.0
    %1404 = vmatpush1.xpose.msra.mxu0 0.0
    %1405 = vmatprep.subr.mxu0 0.0
    %1406 = vmatpush1.xpose.msra.mxu0 0.0
    %1407 = vmatprep.subr.mxu0 0.0
    %1408 = vmatpush1.xpose.msra.mxu0 %v1375
    %1409 = vmatprep.subr.mxu0 0.0
    %1410 = vmatpush2.xpose.msra.mxu0 0.0
    %1411 = vmatprep.subr.mxu0 0.0
    %1412 = vmatpush2.xpose.msra.mxu0 0.0
    %1413 = vmatprep.subr.mxu0 0.0
    %1414 = vmatpush2.xpose.msra.mxu0 0.0
    %1415 = vmatprep.subr.mxu0 0.0
    %1416 = vmatpush2.xpose.msra.mxu0 0.0
    %1417 = vmatprep.subr.mxu0 0.0
    %1418 = vmatpush2.xpose.msra.mxu0 0.0
    %1419 = vmatprep.subr.mxu0 0.0
    %1420 = vmatpush2.xpose.msra.mxu0 0.0
    %1421 = vmatprep.subr.mxu0 0.0
    %1422 = vmatpush2.xpose.msra.mxu0 0.0
    %1423 = vmatprep.subr.mxu0 0.0
    %1424 = vmatpush2.xpose.msra.mxu0 0.0
    %1425 = vmatprep.subr.mxu0 0.0
    %1426 = vmatpush2.xpose.msra.mxu0 0.0
    %1427 = vmatprep.subr.mxu0 0.0
    %1428 = vmatpush2.xpose.msra.mxu0 0.0
    %1429 = vmatprep.subr.mxu0 0.0
    %1430 = vmatpush2.xpose.msra.mxu0 0.0
    %1431 = vmatprep.subr.mxu0 0.0
    %1432 = vmatpush2.xpose.msra.mxu0 0.0
    %1433 = vmatprep.subr.mxu0 0.0
    %1434 = vmatpush2.xpose.msra.mxu0 0.0
    %1435 = vmatprep.subr.mxu0 0.0
    %1436 = vmatpush2.xpose.msra.mxu0 0.0
    %1437 = vmatprep.subr.mxu0 0.0
    %1438 = vmatpush2.xpose.msra.mxu0 0.0
    %1439 = vmatprep.subr.mxu0 0.0
    %1440 = vmatpush2.xpose.msra.mxu0 0.0
    %1441 = vmatprep.mubr.f32.mxu0 0.0
    %1442 = vmatmul.mubr.f32.gmra.mxu0 %v1373
    %v1443 = vpop.f32.mrf.mxu0
    %v1444 = vadd.f32 0.0, %v1443
    %v1445 = vpop.f32.mrf.mxu0
    %1446 = vdwg.mxu0
    %v1447 = vsel %vm188, %v1444, -inf
    %1448 = vmax.xlane.f32.xlu0 %v1447
    %v1449 = vpop.xlane.xlu0 %1448
    %v1450 = vsub.f32 %v1444, %v1449
    %v1451 = vmul.f32 %v1450, 1.442695
    %v1452 = vpow.pop %v1451
    %v1453 = vsel %vm188, %v1452, 0.0
    %1454 = vadd.xlane.f32.xlu0 %v1453
    %v1455 = vpop.xlane.xlu0 %1454
    %v1456 = vrcp.pop %v1455
    %v1457 = vmul.f32 %v1452, %v1456
    %1458 = vrot.lane.b32.xlu0 %v182, 40
    %v1459 = vpop.permute.xlu0 %1458
    %v1462 = vsel %vm188, %v1457, 0
    %1464 = vmatprep.subr.mxu0 0.0
    %1465 = vmatpush1.msra.mxu0 0.0
    %1466 = vmatprep.subr.mxu0 0.0
    %1467 = vmatpush1.msra.mxu0 0.0
    %1468 = vmatprep.subr.mxu0 0.0
    %1469 = vmatpush1.msra.mxu0 0.0
    %1470 = vmatprep.subr.mxu0 0.0
    %1471 = vmatpush1.msra.mxu0 0.0
    %1472 = vmatprep.subr.mxu0 0.0
    %1473 = vmatpush1.msra.mxu0 0.0
    %1474 = vmatprep.subr.mxu0 0.0
    %1475 = vmatpush1.msra.mxu0 0.0
    %1476 = vmatprep.subr.mxu0 0.0
    %1477 = vmatpush1.msra.mxu0 0.0
    %1478 = vmatprep.subr.mxu0 0.0
    %1479 = vmatpush1.msra.mxu0 0.0
    %1480 = vmatprep.subr.mxu0 0.0
    %1481 = vmatpush1.msra.mxu0 0.0
    %1482 = vmatprep.subr.mxu0 0.0
    %1483 = vmatpush1.msra.mxu0 0.0
    %1484 = vmatprep.subr.mxu0 0.0
    %1485 = vmatpush1.msra.mxu0 0.0
    %1486 = vmatprep.subr.mxu0 0.0
    %1487 = vmatpush1.msra.mxu0 0.0
    %1488 = vmatprep.subr.mxu0 0.0
    %1489 = vmatpush1.msra.mxu0 0.0
    %1490 = vmatprep.subr.mxu0 0.0
    %1491 = vmatpush1.msra.mxu0 0.0
    %1492 = vmatprep.subr.mxu0 0.0
    %1493 = vmatpush1.msra.mxu0 0.0
    %1494 = vmatprep.subr.mxu0 0.0
    %1495 = vmatpush1.msra.mxu0 %v1459
    %1496 = vmatprep.subr.mxu0 0.0
    %1497 = vmatpush2.msra.mxu0 0.0
    %1498 = vmatprep.subr.mxu0 0.0
    %1499 = vmatpush2.msra.mxu0 0.0
    %1500 = vmatprep.subr.mxu0 0.0
    %1501 = vmatpush2.msra.mxu0 0.0
    %1502 = vmatprep.subr.mxu0 0.0
    %1503 = vmatpush2.msra.mxu0 0.0
    %1504 = vmatprep.subr.mxu0 0.0
    %1505 = vmatpush2.msra.mxu0 0.0
    %1506 = vmatprep.subr.mxu0 0.0
    %1507 = vmatpush2.msra.mxu0 0.0
    %1508 = vmatprep.subr.mxu0 0.0
    %1509 = vmatpush2.msra.mxu0 0.0
    %1510 = vmatprep.subr.mxu0 0.0
    %1511 = vmatpush2.msra.mxu0 0.0
    %1512 = vmatprep.subr.mxu0 0.0
    %1513 = vmatpush2.msra.mxu0 0.0
    %1514 = vmatprep.subr.mxu0 0.0
    %1515 = vmatpush2.msra.mxu0 0.0
    %1516 = vmatprep.subr.mxu0 0.0
    %1517 = vmatpush2.msra.mxu0 0.0
    %1518 = vmatprep.subr.mxu0 0.0
    %1519 = vmatpush2.msra.mxu0 0.0
    %1520 = vmatprep.subr.mxu0 0.0
    %1521 = vmatpush2.msra.mxu0 0.0
    %1522 = vmatprep.subr.mxu0 0.0
    %1523 = vmatpush2.msra.mxu0 0.0
    %1524 = vmatprep.subr.mxu0 0.0
    %1525 = vmatpush2.msra.mxu0 0.0
    %1526 = vmatprep.subr.mxu0 0.0
    %1527 = vmatpush2.msra.mxu0 0.0
    %1528 = vmatprep.mubr.f32.mxu0 0.0
    %1529 = vmatmul.mubr.f32.gmra.mxu0 %v1462
    %v1530 = vpop.f32.mrf.mxu0
    %v1531 = vadd.f32 0.0, %v1530
    %v1532 = vpop.f32.mrf.mxu0
    %1533 = vdwg.mxu0
    %1535 = vrot.lane.b32.xlu0 %v1531, 24
    %v1536 = vpop.permute.xlu0 %1535
    %1538 = vst.msk [vmem:[#allocation2 + $0x8] sm:$0xff] %vm862, %v1536
    %v1539 = vld [vmem:[#allocation2] sm:$0xff]
    %v1540 = vld [vmem:[#allocation2 + $0x8] sm:$0xff]
    %v1541 = vld [vmem:[%s5] sm:$0xff]
    %v1542 = vld [vmem:[%s5 + $0x8] sm:$0xff]
    %v1543 = vld [vmem:[%s5 + $0x10] sm:$0xff]
    %v1544 = vld [vmem:[%s5 + $0x18] sm:$0xff]
    %v1545 = vld [vmem:[%s6] sm:$0x1]
    %v1547 = vlaneseq
    %v1548 = vshrl.u32 %v1547, 7
    %v1549 = vsub.s32 0, %v1548
    %v1550 = vrot.slane %v1545, %v1549
    %v1553 = vsel %vm49, %v1539, 0
    %v1556 = vsel %vm49, %v1540, 0
    %1558 = vmatprep.subr.mxu0 0.0
    %1559 = vmatpush1.msra.mxu0 0.0
    %1560 = vmatprep.subr.mxu0 0.0
    %1561 = vmatpush1.msra.mxu0 0.0
    %1562 = vmatprep.subr.mxu0 0.0
    %1563 = vmatpush1.msra.mxu0 0.0
    %1564 = vmatprep.subr.mxu0 0.0
    %1565 = vmatpush1.msra.mxu0 0.0
    %1566 = vmatprep.subr.mxu0 0.0
    %1567 = vmatpush1.msra.mxu0 0.0
    %1568 = vmatprep.subr.mxu0 0.0
    %1569 = vmatpush1.msra.mxu0 0.0
    %1570 = vmatprep.subr.mxu0 0.0
    %1571 = vmatpush1.msra.mxu0 0.0
    %1572 = vmatprep.subr.mxu0 0.0
    %1573 = vmatpush1.msra.mxu0 0.0
    %1574 = vmatprep.subr.mxu0 0.0
    %1575 = vmatpush1.msra.mxu0 0.0
    %1576 = vmatprep.subr.mxu0 0.0
    %1577 = vmatpush1.msra.mxu0 0.0
    %1578 = vmatprep.subr.mxu0 0.0
    %1579 = vmatpush1.msra.mxu0 0.0
    %1580 = vmatprep.subr.mxu0 0.0
    %1581 = vmatpush1.msra.mxu0 0.0
    %1582 = vmatprep.subr.mxu0 0.0
    %1583 = vmatpush1.msra.mxu0 %v1544
    %1584 = vmatprep.subr.mxu0 0.0
    %1585 = vmatpush1.msra.mxu0 %v1543
    %1586 = vmatprep.subr.mxu0 0.0
    %1587 = vmatpush1.msra.mxu0 %v1542
    %1588 = vmatprep.subr.mxu0 0.0
    %1589 = vmatpush1.msra.mxu0 %v1541
    %1590 = vmatprep.subr.mxu0 0.0
    %1591 = vmatpush2.msra.mxu0 0.0
    %1592 = vmatprep.subr.mxu0 0.0
    %1593 = vmatpush2.msra.mxu0 0.0
    %1594 = vmatprep.subr.mxu0 0.0
    %1595 = vmatpush2.msra.mxu0 0.0
    %1596 = vmatprep.subr.mxu0 0.0
    %1597 = vmatpush2.msra.mxu0 0.0
    %1598 = vmatprep.subr.mxu0 0.0
    %1599 = vmatpush2.msra.mxu0 0.0
    %1600 = vmatprep.subr.mxu0 0.0
    %1601 = vmatpush2.msra.mxu0 0.0
    %1602 = vmatprep.subr.mxu0 0.0
    %1603 = vmatpush2.msra.mxu0 0.0
    %1604 = vmatprep.subr.mxu0 0.0
    %1605 = vmatpush2.msra.mxu0 0.0
    %1606 = vmatprep.subr.mxu0 0.0
    %1607 = vmatpush2.msra.mxu0 0.0
    %1608 = vmatprep.subr.mxu0 0.0
    %1609 = vmatpush2.msra.mxu0 0.0
    %1610 = vmatprep.subr.mxu0 0.0
    %1611 = vmatpush2.msra.mxu0 0.0
    %1612 = vmatprep.subr.mxu0 0.0
    %1613 = vmatpush2.msra.mxu0 0.0
    %1614 = vmatprep.subr.mxu0 0.0
    %1615 = vmatpush2.msra.mxu0 0.0
    %1616 = vmatprep.subr.mxu0 0.0
    %1617 = vmatpush2.msra.mxu0 0.0
    %1618 = vmatprep.subr.mxu0 0.0
    %1619 = vmatpush2.msra.mxu0 0.0
    %1620 = vmatprep.subr.mxu0 0.0
    %1621 = vmatpush2.msra.mxu0 0.0
    %1622 = vmatprep.mubr.f32.mxu0 0.0
    %1623 = vmatmul.mubr.f32.gmra.mxu0 %v1553
    %v1624 = vpop.f32.mrf.mxu0
    %v1625 = vadd.f32 %v1550, %v1624
    %v1626 = vpop.f32.mrf.mxu0
    %1627 = vmatprep.mubr.f32.mxu0 0.0
    %1628 = vmatmul.mubr.f32.gmra.mxu0 %v1556
    %v1629 = vpop.f32.mrf.mxu0
    %v1630 = vadd.f32 %v1550, %v1629
    %v1631 = vpop.f32.mrf.mxu0
    %1632 = vdwg.mxu0
    %v1633 = vadd.f32 %v45, %v1625
    %v1634 = vadd.f32 %v46, %v1630
    %v1635 = vld [vmem:[%s7] sm:$0x1]
    %v1636 = vld [vmem:[%s8] sm:$0x1]
    %v1637 = vsel %vm49, %v1633, 0.0
    %1638 = vadd.xlane.f32.xlu0 %v1637
    %v1639 = vpop.xlane.xlu0 %1638
    %v1640 = vsel %vm49, %v1634, 0.0
    %1641 = vadd.xlane.f32.xlu0 %v1640
    %v1642 = vpop.xlane.xlu0 %1641
    %v1643 = vmul.f32 %v1639, %v56
    %v1644 = vmul.f32 %v1642, %v56
    %v1645 = vsub.f32 %v1633, %v1643
    %v1646 = vsub.f32 %v1634, %v1644
    %v1647 = vmul.f32 %v1645, %v1645
    %v1648 = vmul.f32 %v1646, %v1646
    %v1649 = vsel %vm49, %v1647, 0.0
    %1650 = vadd.xlane.f32.xlu0 %v1649
    %v1651 = vpop.xlane.xlu0 %1650
    %v1652 = vsel %vm49, %v1648, 0.0
    %1653 = vadd.xlane.f32.xlu0 %v1652
    %v1654 = vpop.xlane.xlu0 %1653
    %v1655 = vmul.f32 %v1651, %v56
    %v1656 = vmul.f32 %v1654, %v56
    %v1657 = vadd.f32 %v1655, 1e-05
    %v1658 = vadd.f32 %v1656, 1e-05
    %v1659 = vrsqrt.pop %v1657
    %v1660 = vrsqrt.pop %v1658
    %v1661 = vmul.f32 %v1645, %v1659
    %v1662 = vmul.f32 %v1646, %v1660
    %v1664 = vlaneseq
    %v1665 = vshrl.u32 %v1664, 7
    %v1666 = vsub.s32 0, %v1665
    %v1667 = vrot.slane %v1635, %v1666
    %v1669 = vmul.f32 %v1661, %v1667
    %v1670 = vmul.f32 %v1662, %v1667
    %v1672 = vlaneseq
    %v1673 = vshrl.u32 %v1672, 7
    %v1674 = vsub.s32 0, %v1673
    %v1675 = vrot.slane %v1636, %v1674
    %v1677 = vadd.f32 %v1669, %v1675
    %v1678 = vadd.f32 %v1670, %v1675
    %v1679 = vld [vmem:[%s9] sm:$0xff]
    %v1680 = vld [vmem:[%s9 + $0x8] sm:$0xff]
    %v1681 = vld [vmem:[%s9 + $0x10] sm:$0xff]
    %v1682 = vld [vmem:[%s9 + $0x18] sm:$0xff]
    %v1683 = vld [vmem:[%s10] sm:$0x1]
    %v1685 = vlaneseq
    %v1686 = vshrl.u32 %v1685, 7
    %v1687 = vsub.s32 0, %v1686
    %v1688 = vrot.slane %v1683, %v1687
    %v1691 = vsel %vm49, %v1677, 0
    %v1694 = vsel %vm49, %v1678, 0
    %1696 = vmatprep.subr.mxu0 0.0
    %1697 = vmatpush1.msra.mxu0 0.0
    %1698 = vmatprep.subr.mxu0 0.0
    %1699 = vmatpush1.msra.mxu0 0.0
    %1700 = vmatprep.subr.mxu0 0.0
    %1701 = vmatpush1.msra.mxu0 0.0
    %1702 = vmatprep.subr.mxu0 0.0
    %1703 = vmatpush1.msra.mxu0 0.0
    %1704 = vmatprep.subr.mxu0 0.0
    %1705 = vmatpush1.msra.mxu0 0.0
    %1706 = vmatprep.subr.mxu0 0.0
    %1707 = vmatpush1.msra.mxu0 0.0
    %1708 = vmatprep.subr.mxu0 0.0
    %1709 = vmatpush1.msra.mxu0 0.0
    %1710 = vmatprep.subr.mxu0 0.0
    %1711 = vmatpush1.msra.mxu0 0.0
    %1712 = vmatprep.subr.mxu0 0.0
    %1713 = vmatpush1.msra.mxu0 0.0
    %1714 = vmatprep.subr.mxu0 0.0
    %1715 = vmatpush1.msra.mxu0 0.0
    %1716 = vmatprep.subr.mxu0 0.0
    %1717 = vmatpush1.msra.mxu0 0.0
    %1718 = vmatprep.subr.mxu0 0.0
    %1719 = vmatpush1.msra.mxu0 0.0
    %1720 = vmatprep.subr.mxu0 0.0
    %1721 = vmatpush1.msra.mxu0 %v1682
    %1722 = vmatprep.subr.mxu0 0.0
    %1723 = vmatpush1.msra.mxu0 %v1681
    %1724 = vmatprep.subr.mxu0 0.0
    %1725 = vmatpush1.msra.mxu0 %v1680
    %1726 = vmatprep.subr.mxu0 0.0
    %1727 = vmatpush1.msra.mxu0 %v1679
    %1728 = vmatprep.subr.mxu0 0.0
    %1729 = vmatpush2.msra.mxu0 0.0
    %1730 = vmatprep.subr.mxu0 0.0
    %1731 = vmatpush2.msra.mxu0 0.0
    %1732 = vmatprep.subr.mxu0 0.0
    %1733 = vmatpush2.msra.mxu0 0.0
    %1734 = vmatprep.subr.mxu0 0.0
    %1735 = vmatpush2.msra.mxu0 0.0
    %1736 = vmatprep.subr.mxu0 0.0
    %1737 = vmatpush2.msra.mxu0 0.0
    %1738 = vmatprep.subr.mxu0 0.0
    %1739 = vmatpush2.msra.mxu0 0.0
    %1740 = vmatprep.subr.mxu0 0.0
    %1741 = vmatpush2.msra.mxu0 0.0
    %1742 = vmatprep.subr.mxu0 0.0
    %1743 = vmatpush2.msra.mxu0 0.0
    %1744 = vmatprep.subr.mxu0 0.0
    %1745 = vmatpush2.msra.mxu0 0.0
    %1746 = vmatprep.subr.mxu0 0.0
    %1747 = vmatpush2.msra.mxu0 0.0
    %1748 = vmatprep.subr.mxu0 0.0
    %1749 = vmatpush2.msra.mxu0 0.0
    %1750 = vmatprep.subr.mxu0 0.0
    %1751 = vmatpush2.msra.mxu0 0.0
    %1752 = vmatprep.subr.mxu0 0.0
    %1753 = vmatpush2.msra.mxu0 0.0
    %1754 = vmatprep.subr.mxu0 0.0
    %1755 = vmatpush2.msra.mxu0 0.0
    %1756 = vmatprep.subr.mxu0 0.0
    %1757 = vmatpush2.msra.mxu0 0.0
    %1758 = vmatprep.subr.mxu0 0.0
    %1759 = vmatpush2.msra.mxu0 0.0
    %1760 = vmatprep.mubr.f32.mxu0 0.0
    %1761 = vmatmul.mubr.f32.gmra.mxu0 %v1691
    %v1762 = vpop.f32.mrf.mxu0
    %v1763 = vadd.f32 %v1688, %v1762
    %v1764 = vpop.f32.mrf.mxu0
    %1765 = vmatprep.mubr.f32.mxu0 0.0
    %1766 = vmatmul.mubr.f32.gmra.mxu0 %v1694
    %v1767 = vpop.f32.mrf.mxu0
    %v1768 = vadd.f32 %v1688, %v1767
    %v1769 = vpop.f32.mrf.mxu0
    %1770 = vdwg.mxu0
    %v1771 = vmul.f32 %v1763, 0.5
    %v1772 = vmul.f32 %v1768, 0.5
    %v1773 = vmul.f32 %v1763, 0.70710677
    %v1774 = vmul.f32 %v1768, 0.70710677
    %v1775 = vand.u32 2147483647, %v1773
    %v1776 = vand.u32 2147483647, %v1774
    %v1777 = vmul.f32 %v1775, 0.3275911
    %v1778 = vmul.f32 %v1776, 0.3275911
    %v1779 = vadd.f32 %v1777, 1.0
    %v1780 = vadd.f32 %v1778, 1.0
    %v1781 = vrcp.pop %v1779
    %v1782 = vmul.f32 1.0, %v1781
    %v1783 = vrcp.pop %v1780
    %v1784 = vmul.f32 1.0, %v1783
    %v1785 = vmul.f32 %v1782, 1.0614054
    %v1786 = vmul.f32 %v1784, 1.0614054
    %v1787 = vadd.f32 %v1785, -1.4531521
    %v1788 = vadd.f32 %v1786, -1.4531521
    %v1789 = vmul.f32 %v1787, %v1782
    %v1790 = vmul.f32 %v1788, %v1784
    %v1791 = vadd.f32 %v1789, 1.4214138
    %v1792 = vadd.f32 %v1790, 1.4214138
    %v1793 = vmul.f32 %v1791, %v1782
    %v1794 = vmul.f32 %v1792, %v1784
    %v1795 = vadd.f32 %v1793, -0.28449672
    %v1796 = vadd.f32 %v1794, -0.28449672
    %v1797 = vmul.f32 %v1795, %v1782
    %v1798 = vmul.f32 %v1796, %v1784
    %v1799 = vadd.f32 %v1797, 0.2548296
    %v1800 = vadd.f32 %v1798, 0.2548296
    %v1801 = vmul.f32 %v1799, %v1782
    %v1802 = vmul.f32 %v1800, %v1784
    %v1803 = vsub.f32 0.0, %v1775
    %v1804 = vsub.f32 0.0, %v1776
    %v1805 = vmul.f32 %v1803, %v1775
    %v1806 = vmul.f32 %v1804, %v1776
    %v1807 = vmul.f32 %v1805, 1.442695
    %v1808 = vpow.pop %v1807
    %v1809 = vmul.f32 %v1806, 1.442695
    %v1810 = vpow.pop %v1809
    %v1811 = vmul.f32 %v1801, %v1808
    %v1812 = vmul.f32 %v1802, %v1810
    %v1813 = vsub.f32 1.0, %v1811
    %v1814 = vsub.f32 1.0, %v1812
    %vm1815 = vcmp.lt.f32.partialorder %v1773, 0.0
    %vm1816 = vcmp.lt.f32.partialorder %v1774, 0.0
    %v1817 = vsub.f32 0.0, %v1813
    %v1818 = vsub.f32 0.0, %v1814
    %v1819 = vsel %vm1815, %v1817, %v1813
    %v1820 = vsel %vm1816, %v1818, %v1814
    %v1821 = vadd.f32 %v1819, 1.0
    %v1822 = vadd.f32 %v1820, 1.0
    %v1823 = vmul.f32 %v1771, %v1821
    %v1824 = vmul.f32 %v1772, %v1822
    %v1825 = vld [vmem:[%s11] sm:$0xff]
    %v1826 = vld [vmem:[%s11 + $0x8] sm:$0xff]
    %v1827 = vld [vmem:[%s11 + $0x10] sm:$0xff]
    %v1828 = vld [vmem:[%s11 + $0x18] sm:$0xff]
    %v1829 = vld [vmem:[%s11 + $0x20] sm:$0xff]
    %v1830 = vld [vmem:[%s11 + $0x28] sm:$0xff]
    %v1831 = vld [vmem:[%s11 + $0x30] sm:$0xff]
    %v1832 = vld [vmem:[%s11 + $0x38] sm:$0xff]
    %v1833 = vld [vmem:[%s11 + $0x40] sm:$0xff]
    %v1834 = vld [vmem:[%s11 + $0x48] sm:$0xff]
    %v1835 = vld [vmem:[%s11 + $0x50] sm:$0xff]
    %v1836 = vld [vmem:[%s11 + $0x58] sm:$0xff]
    %v1837 = vld [vmem:[%s11 + $0x60] sm:$0xff]
    %v1838 = vld [vmem:[%s11 + $0x68] sm:$0xff]
    %v1839 = vld [vmem:[%s11 + $0x70] sm:$0xff]
    %v1840 = vld [vmem:[%s11 + $0x78] sm:$0xff]
    %v1841 = vld [vmem:[%s12] sm:$0x1]
    %v1843 = vlaneseq
    %v1844 = vshrl.u32 %v1843, 7
    %v1845 = vsub.s32 0, %v1844
    %v1846 = vrot.slane %v1841, %v1845
    %1848 = vmatprep.subr.mxu0 0.0
    %1849 = vmatpush1.msra.mxu0 %v1840
    %1850 = vmatprep.subr.mxu0 0.0
    %1851 = vmatpush1.msra.mxu0 %v1839
    %1852 = vmatprep.subr.mxu0 0.0
    %1853 = vmatpush1.msra.mxu0 %v1838
    %1854 = vmatprep.subr.mxu0 0.0
    %1855 = vmatpush1.msra.mxu0 %v1837
    %1856 = vmatprep.subr.mxu0 0.0
    %1857 = vmatpush1.msra.mxu0 %v1836
    %1858 = vmatprep.subr.mxu0 0.0
    %1859 = vmatpush1.msra.mxu0 %v1835
    %1860 = vmatprep.subr.mxu0 0.0
    %1861 = vmatpush1.msra.mxu0 %v1834
    %1862 = vmatprep.subr.mxu0 0.0
    %1863 = vmatpush1.msra.mxu0 %v1833
    %1864 = vmatprep.subr.mxu0 0.0
    %1865 = vmatpush1.msra.mxu0 %v1832
    %1866 = vmatprep.subr.mxu0 0.0
    %1867 = vmatpush1.msra.mxu0 %v1831
    %1868 = vmatprep.subr.mxu0 0.0
    %1869 = vmatpush1.msra.mxu0 %v1830
    %1870 = vmatprep.subr.mxu0 0.0
    %1871 = vmatpush1.msra.mxu0 %v1829
    %1872 = vmatprep.subr.mxu0 0.0
    %1873 = vmatpush1.msra.mxu0 %v1828
    %1874 = vmatprep.subr.mxu0 0.0
    %1875 = vmatpush1.msra.mxu0 %v1827
    %1876 = vmatprep.subr.mxu0 0.0
    %1877 = vmatpush1.msra.mxu0 %v1826
    %1878 = vmatprep.subr.mxu0 0.0
    %1879 = vmatpush1.msra.mxu0 %v1825
    %1880 = vmatprep.subr.mxu0 0.0
    %1881 = vmatpush2.msra.mxu0 0.0
    %1882 = vmatprep.subr.mxu0 0.0
    %1883 = vmatpush2.msra.mxu0 0.0
    %1884 = vmatprep.subr.mxu0 0.0
    %1885 = vmatpush2.msra.mxu0 0.0
    %1886 = vmatprep.subr.mxu0 0.0
    %1887 = vmatpush2.msra.mxu0 0.0
    %1888 = vmatprep.subr.mxu0 0.0
    %1889 = vmatpush2.msra.mxu0 0.0
    %1890 = vmatprep.subr.mxu0 0.0
    %1891 = vmatpush2.msra.mxu0 0.0
    %1892 = vmatprep.subr.mxu0 0.0
    %1893 = vmatpush2.msra.mxu0 0.0
    %1894 = vmatprep.subr.mxu0 0.0
    %1895 = vmatpush2.msra.mxu0 0.0
    %1896 = vmatprep.subr.mxu0 0.0
    %1897 = vmatpush2.msra.mxu0 0.0
    %1898 = vmatprep.subr.mxu0 0.0
    %1899 = vmatpush2.msra.mxu0 0.0
    %1900 = vmatprep.subr.mxu0 0.0
    %1901 = vmatpush2.msra.mxu0 0.0
    %1902 = vmatprep.subr.mxu0 0.0
    %1903 = vmatpush2.msra.mxu0 0.0
    %1904 = vmatprep.subr.mxu0 0.0
    %1905 = vmatpush2.msra.mxu0 0.0
    %1906 = vmatprep.subr.mxu0 0.0
    %1907 = vmatpush2.msra.mxu0 0.0
    %1908 = vmatprep.subr.mxu0 0.0
    %1909 = vmatpush2.msra.mxu0 0.0
    %1910 = vmatprep.subr.mxu0 0.0
    %1911 = vmatpush2.msra.mxu0 0.0
    %1912 = vmatprep.mubr.f32.mxu0 0.0
    %1913 = vmatmul.mubr.f32.gmra.mxu0 %v1823
    %v1914 = vpop.f32.mrf.mxu0
    %v1915 = vadd.f32 %v1846, %v1914
    %v1916 = vpop.f32.mrf.mxu0
    %1917 = vmatprep.mubr.f32.mxu0 0.0
    %1918 = vmatmul.mubr.f32.gmra.mxu0 %v1824
    %v1919 = vpop.f32.mrf.mxu0
    %v1920 = vadd.f32 %v1846, %v1919
    %v1921 = vpop.f32.mrf.mxu0
    %1922 = vdwg.mxu0
    %v1923 = vadd.f32 %v1633, %v1915
    %v1924 = vadd.f32 %v1634, %v1920
    %1925 = vst.msk [vmem:[#allocation3] sm:$0xff] %vm49, %v1923
    %1926 = vst.msk [vmem:[#allocation3 + $0x8] sm:$0xff] %vm49, %v1924
    // Predicated region
    $region54: #{tpu_custom_call.1} parent=1 // pred_check
      _
    $region55: #{tpu_custom_call.1} parent=1 // pred_check_branch
      %1928 = sbr.rel (0) target = $region57
    $region56: #{tpu_custom_call.1} parent=1 // pred_region
      %s1930 = ssub.s32 256, 256
      %1931 = vsyncadd [#allocation4], %s1930
      %s1932 = sshll.u32 [#allocation3], 4
      %s1933 = int_to_ptr.vmem [resolvable:$true] %s1932
      %1938 = dma.vmem_to_hbm [thread:$0]  %s1933, 256, %s13, [#allocation4], 128, 128, 8
    $region57: #{tpu_custom_call.1} parent=1 // pred_fallthru
      _
    // Predicated region
    $region58: #{tpu_custom_call.1} parent=1 // pred_check
      _
    $region59: #{tpu_custom_call.1} parent=1 // pred_check_branch
      %1940 = sbr.rel (0) target = $region61
    $region60: #{tpu_custom_call.1} parent=1 // pred_region
      %1941 = dma.done [#allocation4], 256
    $region61: #{tpu_custom_call.1} parent=1 // pred_fallthru
      _
    %1942 = vsyncpa [#allocation4], 1

</llo_original>
